<compile_context>
chip_gen: v6e
topology: v6e:2x2x1
jax: 0.10.0
libtpu: 0.0.40
codegen_flags: <defaults>
</compile_context>

<pallas_src>
import numpy as np
import jax
import jax.numpy as jnp
from jax import lax
from jax.experimental import pallas as pl
from jax.experimental.pallas import tpu as pltpu

_EPS = 1e-5


def _round_up(x, m):
    return (x + m - 1) // m * m


def _pick_points_chunk(n, target):
    """Chunk size for streaming conv3 over the points axis: n itself if it fits,
    else the largest divisor of n that is <= target and a multiple of 8."""
    if n <= target:
        return n
    start = target - target % 8
    for c in range(start, 7, -8):
        if n % c == 0:
            return c
    # TODO(synk): pad/mask the points axis when N has no tile-aligned divisor.
    return n


def _pick_batch_block(B, N, NT, act_itemsize):
    """Largest batch block Bt (divisor of B) that (a) keeps >= 2 grid steps so a v7x
    megacore actually splits the batch, (b) stays inside a conservative per-step VMEM
    budget, (c) does not oversize the matmul M dimension."""
    if B <= 1:
        return 1
    # Dominant per-batch live set (f32): raw conv3 chunk + conv2 act (+ temps) + scratch.
    per_batch = (NT * 1024 * 4 + N * 128 * 4 * 2 + N * 64 * 4 * 2
                 + N * 128 * act_itemsize)
    budget = 8 << 20
    feasible = []
    for bt in range(1, B + 1):
        if B % bt:
            continue
        if B // bt < 2:                      # keep both v7x TensorCores busy
            continue
        if bt * per_batch > budget or bt * N > 8192:
            continue
        feasible.append(bt)
    if not feasible:
        return 1
    even = [bt for bt in feasible if (B // bt) % 2 == 0]
    return max(even) if even else max(feasible)


def _vmem_limit_bytes(default=48 * 1024 * 1024):
    """Generation-aware VMEM limit: ~75% of physical capacity (64 MiB on v7x,
    128 MiB on v5e/v6e); falls back to 48 MiB if the query is unavailable."""
    try:
        cap = getattr(pltpu.get_tpu_info(), "vmem_capacity_bytes", None)
        if cap:
            return int(cap) * 3 // 4
    except Exception:
        pass
    return default


# ----------------------------------------------------------------------------------------
# Stage 1: conv1/2/3 + InstanceNorm(+ReLU) over points + folded global max-pool -> g
# ----------------------------------------------------------------------------------------
def _make_point_kernel(Bt, N, NT, num_chunks):
    chunked = num_chunks > 1

    def kernel(x_ref,               # (Bt, Cp, N) f32 — channels on sublanes, points on lanes
               w1_ref, b1_ref,      # (Cp, 64) f32, (1, 64) f32
               w2_ref, b2_ref,      # (64, 128) compute_dtype, (1, 128) f32
               w3_ref,              # (128, 1024) compute_dtype  (conv3 bias cancels)
               g_ref,               # (Bt, 1, 1024) f32 out
               *scratch):           # optional (Bt*N, 128) compute_dtype scratch
        # ---- conv1 (tiny K; <1% of FLOPs): per batch element, transposed-LHS contraction
        # keeps x in its dense (Bt, Cp, N) DMA layout.
        rows = []
        for b in range(Bt):
            h1b = lax.dot_general(
                x_ref[b], w1_ref[...],
                dimension_numbers=(((0,), (0,)), ((), ())),
                preferred_element_type=jnp.float32) + b1_ref[...]        # (N, 64)
            m1 = jnp.mean(h1b, axis=0, keepdims=True)
            v1 = jnp.mean(jnp.square(h1b - m1), axis=0, keepdims=True)
            rows.append(jnp.maximum((h1b - m1) * lax.rsqrt(v1 + _EPS), 0.0))
        h1 = rows[0] if Bt == 1 else jnp.concatenate(rows, axis=0)       # (Bt*N, 64)

        # ---- conv2: single matmul with M = Bt*N (fills the MXU M dimension).
        h2 = jnp.dot(h1.astype(w2_ref.dtype), w2_ref[...],
                     preferred_element_type=jnp.float32)                 # (Bt*N, 128)
        h2 = h2.reshape(Bt, N, 128) + b2_ref[...]
        m2 = jnp.mean(h2, axis=1, keepdims=True)
        v2 = jnp.mean(jnp.square(h2 - m2), axis=1, keepdims=True)
        h2 = jnp.maximum((h2 - m2) * lax.rsqrt(v2 + _EPS), 0.0)          # (Bt, N, 128) f32

        # ---- conv3 with folded InstanceNorm+ReLU+max: only max / sum / sumsq of the raw
        # conv3 output are needed (bias b3 cancels exactly and is skipped).
        if not chunked:
            h3 = jnp.dot(h2.astype(w3_ref.dtype).reshape(Bt * N, 128), w3_ref[...],
                         preferred_element_type=jnp.float32).reshape(Bt, N, 1024)
            mx = jnp.max(h3, axis=1)
            s = jnp.sum(h3, axis=1)
            ss = jnp.sum(h3 * h3, axis=1)
        else:
            h2_ref = scratch[0]
            h2_ref[...] = h2.reshape(Bt * N, 128).astype(h2_ref.dtype)

            def body(ci, carry):
                mx, s, ss = carry
                start = pl.multiple_of(ci * NT, NT)
                if Bt == 1:
                    hc = h2_ref[pl.ds(start, NT), :]                     # (NT, 128)
                else:
                    hc = jnp.concatenate(
                        [h2_ref[pl.ds(b * N + start, NT), :] for b in range(Bt)],
                        axis=0)                                          # (Bt*NT, 128)
                h3 = jnp.dot(hc, w3_ref[...],
                             preferred_element_type=jnp.float32).reshape(Bt, NT, 1024)
                return (jnp.maximum(mx, jnp.max(h3, axis=1)),
                        s + jnp.sum(h3, axis=1),
                        ss + jnp.sum(h3 * h3, axis=1))

            init = (jnp.full((Bt, 1024), -jnp.inf, dtype=jnp.float32),
                    jnp.zeros((Bt, 1024), dtype=jnp.float32),
                    jnp.zeros((Bt, 1024), dtype=jnp.float32))
            mx, s, ss = lax.fori_loop(0, num_chunks, body, init)

        inv_n = 1.0 / float(N)
        mean3 = s * inv_n
        var3 = jnp.maximum(ss * inv_n - mean3 * mean3, 0.0)   # guard f32 cancellation
        g = jnp.maximum((mx - mean3) * lax.rsqrt(var3 + _EPS), 0.0)      # (Bt, 1024)
        g_ref[...] = g[:, None, :]

    return kernel


# ----------------------------------------------------------------------------------------
# Stage 2: FC head (fc1/fc2 + InstanceNorm + ReLU, fc3 + identity) over the whole batch.
# ----------------------------------------------------------------------------------------
def _stn3d_head_kernel(g_ref,               # (B, 1024) f32
                       wf1_ref, bf1_ref,    # (1024, 512), (1, 512)
                       wf2_ref, bf2_ref,    # (512, 256),  (1, 256)
                       wf3_ref, bf3_ref,    # (256, 9),    (1, 9)
                       o_ref):              # (B, 9)
    def inorm_relu_rows(h):                 # each row normalized over its features
        m = jnp.mean(h, axis=1, keepdims=True)
        v = jnp.mean(jnp.square(h - m), axis=1, keepdims=True)
        return jnp.maximum((h - m) * lax.rsqrt(v + _EPS), 0.0)

    f = jnp.dot(g_ref[...], wf1_ref[...], preferred_element_type=jnp.float32) + bf1_ref[...]
    f = inorm_relu_rows(f)                                               # (B, 512)
    f = jnp.dot(f, wf2_ref[...], preferred_element_type=jnp.float32) + bf2_ref[...]
    f = inorm_relu_rows(f)                                               # (B, 256)
    out = jnp.dot(f, wf3_ref[...], preferred_element_type=jnp.float32) + bf3_ref[...]

    # add flattened 3x3 identity: positions 0, 4, 8
    col = lax.broadcasted_iota(jnp.int32, out.shape, 1)
    o_ref[...] = out + jnp.where(col % 4 == 0, 1.0, 0.0).astype(out.dtype)


def stn3d_forward(x, params, compute_dtype=jnp.bfloat16, batch_block=None, points_chunk=512):
    """x: (B, C, N) float32 (PyTorch Conv1d layout). Returns (B, 3, 3).

    compute_dtype: dtype of the conv2/conv3 matmul *operands* (bf16 default — MXU-native
    on every TPU generation).  Accumulation and all norm statistics stay f32.
    """
    (w1, b1, w2, b2, w3, b3, wf1, bf1, wf2, bf2, wf3, bf3) = params
    del b3  # per-channel conv3 bias cancels exactly under the folded InstanceNorm
    B, C, N = x.shape

    # Zero-pad the channel axis to a multiple of 8 (zero rows contribute nothing).
    Cp = _round_up(C, 8)
    x = x.astype(jnp.float32)
    w1 = w1.astype(jnp.float32)
    if Cp != C:
        x = jnp.pad(x, ((0, 0), (0, Cp - C), (0, 0)))
        w1 = jnp.pad(w1, ((0, Cp - C), (0, 0)))

    w2c = w2.astype(compute_dtype)
    w3c = w3.astype(compute_dtype)

    NT = _pick_points_chunk(N, points_chunk)
    num_chunks = N // NT if N % NT == 0 else 1
    if batch_block is None:
        Bt = _pick_batch_block(B, N, NT, jnp.dtype(compute_dtype).itemsize)
    else:
        Bt = int(batch_block)
    assert B % Bt == 0, "batch_block must divide the batch size"

    def _resident(arr):   # full block + constant index map -> VMEM-resident across steps
        zeros = (0,) * arr.ndim
        return pl.BlockSpec(arr.shape, lambda i, _z=zeros: _z)

    scratch_shapes = ([pltpu.VMEM((Bt * N, 128), compute_dtype)] if num_chunks > 1 else [])

    g = pl.pallas_call(
        _make_point_kernel(Bt, N, NT, num_chunks),
        out_shape=jax.ShapeDtypeStruct((B, 1, 1024), jnp.float32),
        grid=(B // Bt,),
        in_specs=[
            pl.BlockSpec((Bt, Cp, N), lambda i: (i, 0, 0)),   # dense-lane x blocks
            _resident(w1), _resident(b1),
            _resident(w2c), _resident(b2),
            _resident(w3c),
        ],
        out_specs=pl.BlockSpec((Bt, 1, 1024), lambda i: (i, 0, 0)),
        scratch_shapes=scratch_shapes,
        compiler_params=pltpu.CompilerParams(
            dimension_semantics=("parallel",),      # megacore-shard batch steps on v7x
            vmem_limit_bytes=_vmem_limit_bytes(),
        ),
    )(x, w1, b1, w2c, b2, w3c)

    g2 = g.reshape(B, 1024)

    vmem = lambda: pl.BlockSpec(memory_space=pltpu.MemorySpace.VMEM)
    head_args = (g2, wf1, bf1, wf2, bf2, wf3, bf3)
    # TODO(synk): block the FC head over B (e.g. 256-row tiles) if the batch gets very large.
    out9 = pl.pallas_call(
        _stn3d_head_kernel,
        out_shape=jax.ShapeDtypeStruct((B, 9), jnp.float32),
        in_specs=[vmem() for _ in head_args],
        out_specs=vmem(),
    )(*head_args)
    return out9.reshape(B, 3, 3)


def init_params(key, channel):
    """Deterministic PyTorch-style uniform(-1/sqrt(fan_in), 1/sqrt(fan_in)) init.
    Weights stored pre-transposed as (in_features, out_features)."""
    def uni(k, shape, fan_in):
        bound = 1.0 / np.sqrt(fan_in)
        return jax.random.uniform(k, shape, jnp.float32, -bound, bound)

    ks = jax.random.split(key, 12)
    return (
        uni(ks[0], (channel, 64), channel), uni(ks[1], (1, 64), channel),     # conv1
        uni(ks[2], (64, 128), 64),          uni(ks[3], (1, 128), 64),         # conv2
        uni(ks[4], (128, 1024), 128),       uni(ks[5], (1, 1024), 128),       # conv3
        uni(ks[6], (1024, 512), 1024),      uni(ks[7], (1, 512), 1024),       # fc1
        uni(ks[8], (512, 256), 512),        uni(ks[9], (1, 256), 512),        # fc2
        uni(ks[10], (256, 9), 256),         uni(ks[11], (1, 9), 256),         # fc3
    )


def stn3d_reference(x, params):
    """Pure-JAX f32 reference with identical semantics (for a sanity check)."""
    (w1, b1, w2, b2, w3, b3, wf1, bf1, wf2, bf2, wf3, bf3) = params
    B = x.shape[0]
    h = jnp.transpose(x, (0, 2, 1)).astype(jnp.float32)          # (B, N, C)

    def inorm_pts(a):   # normalize over points axis (1) per (batch, channel)
        m = jnp.mean(a, axis=1, keepdims=True)
        v = jnp.mean(jnp.square(a - m), axis=1, keepdims=True)
        return (a - m) * lax.rsqrt(v + _EPS)

    def inorm_feat(a):  # normalize each row over its features
        m = jnp.mean(a, axis=1, keepdims=True)
        v = jnp.mean(jnp.square(a - m), axis=1, keepdims=True)
        return (a - m) * lax.rsqrt(v + _EPS)

    h = jax.nn.relu(inorm_pts(jnp.einsum("bnc,ck->bnk", h, w1) + b1))
    h = jax.nn.relu(inorm_pts(jnp.einsum("bnc,ck->bnk", h, w2) + b2))
    h = jax.nn.relu(inorm_pts(jnp.einsum("bnc,ck->bnk", h, w3) + b3))
    g = jnp.max(h, axis=1)                                       # (B, 1024)
    f = jax.nn.relu(inorm_feat(g @ wf1 + bf1))
    f = jax.nn.relu(inorm_feat(f @ wf2 + bf2))
    out = f @ wf3 + bf3
    iden = jnp.eye(3, dtype=jnp.float32).reshape(1, 9)
    return (out + iden).reshape(B, 3, 3)


if __name__ == "__main__":
    key = jax.random.PRNGKey(0)
    kx, kp, kx2 = jax.random.split(key, 3)

    # Main (small) shapes: batch=2, channel=3 (xyz), 16 points.
    B, C, N = 2, 3, 16
    x = jax.random.normal(kx, (B, C, N), dtype=jnp.float32)
    params = init_params(kp, C)
    ref = jax.block_until_ready(stn3d_reference(x, params))

    # Exact-semantics f32 path.
    out_f32 = jax.block_until_ready(stn3d_forward(x, params, compute_dtype=jnp.float32))
    assert out_f32.shape == (B, 3, 3)
    np.testing.assert_allclose(np.asarray(out_f32), np.asarray(ref), rtol=2e-3, atol=2e-3)

    # Default path: bf16 matmul operands, f32 accumulation / norm stats.
    out_bf16 = jax.block_until_ready(stn3d_forward(x, params))
    np.testing.assert_allclose(np.asarray(out_bf16), np.asarray(ref), rtol=4e-2, atol=4e-2)

    # Exercise the batch-blocked (Bt=2) + points-chunked (streaming conv3) path.
    B2, N2 = 4, 256
    x2 = jax.random.normal(kx2, (B2, C, N2), dtype=jnp.float32)
    ref2 = jax.block_until_ready(stn3d_reference(x2, params))
    out2 = jax.block_until_ready(
        stn3d_forward(x2, params, compute_dtype=jnp.float32, points_chunk=64))
    np.testing.assert_allclose(np.asarray(out2), np.asarray(ref2), rtol=2e-3, atol=2e-3)
    out2_bf16 = jax.block_until_ready(stn3d_forward(x2, params, points_chunk=64))
    np.testing.assert_allclose(np.asarray(out2_bf16), np.asarray(ref2), rtol=4e-2, atol=4e-2)

    print("KERNEL_OK")
</pallas_src>

<mosaic_0001>
module attributes {stable_mosaic.version = 11 : i64} {
  func.func @kernel(%arg0: i32, %arg1: memref<1x8x16xf32, #tpu.memory_space<vmem>>, %arg2: memref<8x64xf32, #tpu.memory_space<vmem>>, %arg3: memref<1x64xf32, #tpu.memory_space<vmem>>, %arg4: memref<64x128xf32, #tpu.memory_space<vmem>>, %arg5: memref<1x128xf32, #tpu.memory_space<vmem>>, %arg6: memref<128x1024xf32, #tpu.memory_space<vmem>>, %arg7: memref<1x1x1024xf32, #tpu.memory_space<vmem>>) attributes {dimension_semantics = [#tpu.dimension_semantics<parallel>], iteration_bounds = array<i64: 2>, scalar_prefetch = 0 : i64, scratch_operands = 0 : i64, tpu.core_type = #tpu.core_type<tc>, window_params = [{transform_indices = @transform_0, window_bounds = array<i64: 1, 8, 16>}, {pipeline_mode = #tpu.pipeline_mode<synchronous>, transform_indices = @transform_1, window_bounds = array<i64: 8, 64>}, {pipeline_mode = #tpu.pipeline_mode<synchronous>, transform_indices = @transform_2, window_bounds = array<i64: 1, 64>}, {pipeline_mode = #tpu.pipeline_mode<synchronous>, transform_indices = @transform_3, window_bounds = array<i64: 64, 128>}, {pipeline_mode = #tpu.pipeline_mode<synchronous>, transform_indices = @transform_4, window_bounds = array<i64: 1, 128>}, {pipeline_mode = #tpu.pipeline_mode<synchronous>, transform_indices = @transform_5, window_bounds = array<i64: 128, 1024>}, {transform_indices = @transform_6, window_bounds = array<i64: 1, 1, 1024>}]} {
    %c0 = arith.constant 0 : index
    %c0_0 = arith.constant 0 : index
    %c0_1 = arith.constant 0 : index
    %0 = vector.load %arg1[%c0, %c0_0, %c0_1] : memref<1x8x16xf32, #tpu.memory_space<vmem>>, vector<1x8x16xf32>
    %1 = vector.shape_cast %0 : vector<1x8x16xf32> to vector<8x16xf32>
    %c0_2 = arith.constant 0 : index
    %c0_3 = arith.constant 0 : index
    %2 = vector.load %arg2[%c0_2, %c0_3] : memref<8x64xf32, #tpu.memory_space<vmem>>, vector<8x64xf32>
    %cst = arith.constant dense<0.000000e+00> : vector<16x64xf32>
    %3 = tpu.matmul %1, %2, %cst {dimension_numbers = #tpu.dot_dimension_numbers<[0], [0], [1], [1], [0, 1, 1, 1], [], []>} : vector<8x16xf32>, vector<8x64xf32>, vector<16x64xf32> -> vector<16x64xf32>
    %c0_4 = arith.constant 0 : index
    %c0_5 = arith.constant 0 : index
    %4 = vector.load %arg3[%c0_4, %c0_5] : memref<1x64xf32, #tpu.memory_space<vmem>>, vector<1x64xf32>
    %5 = vector.broadcast %4 : vector<1x64xf32> to vector<16x64xf32>
    %6 = arith.addf %3, %5 : vector<16x64xf32>
    %cst_6 = arith.constant dense<0.000000e+00> : vector<64xf32>
    %7 = vector.multi_reduction <add>, %6, %cst_6 [0] : vector<16x64xf32> to vector<64xf32>
    %8 = vector.shape_cast %7 : vector<64xf32> to vector<1x64xf32>
    %cst_7 = arith.constant 1.600000e+01 : f32
    %9 = vector.broadcast %cst_7 : f32 to vector<1x64xf32>
    %10 = arith.divf %8, %9 : vector<1x64xf32>
    %11 = vector.broadcast %10 : vector<1x64xf32> to vector<16x64xf32>
    %12 = arith.subf %6, %11 : vector<16x64xf32>
    %13 = arith.mulf %12, %12 : vector<16x64xf32>
    %cst_8 = arith.constant dense<0.000000e+00> : vector<64xf32>
    %14 = vector.multi_reduction <add>, %13, %cst_8 [0] : vector<16x64xf32> to vector<64xf32>
    %15 = vector.shape_cast %14 : vector<64xf32> to vector<1x64xf32>
    %cst_9 = arith.constant 1.600000e+01 : f32
    %16 = vector.broadcast %cst_9 : f32 to vector<1x64xf32>
    %17 = arith.divf %15, %16 : vector<1x64xf32>
    %18 = vector.broadcast %10 : vector<1x64xf32> to vector<16x64xf32>
    %19 = arith.subf %6, %18 : vector<16x64xf32>
    %cst_10 = arith.constant 9.99999974E-6 : f32
    %20 = vector.broadcast %cst_10 : f32 to vector<1x64xf32>
    %21 = arith.addf %17, %20 : vector<1x64xf32>
    %22 = math.rsqrt %21 : vector<1x64xf32>
    %23 = vector.broadcast %22 : vector<1x64xf32> to vector<16x64xf32>
    %24 = arith.mulf %19, %23 : vector<16x64xf32>
    %cst_11 = arith.constant 0.000000e+00 : f32
    %25 = vector.broadcast %cst_11 : f32 to vector<16x64xf32>
    %26 = arith.maximumf %24, %25 : vector<16x64xf32>
    %c0_12 = arith.constant 0 : index
    %c0_13 = arith.constant 0 : index
    %27 = vector.load %arg4[%c0_12, %c0_13] : memref<64x128xf32, #tpu.memory_space<vmem>>, vector<64x128xf32>
    %cst_14 = arith.constant dense<0.000000e+00> : vector<16x128xf32>
    %28 = tpu.matmul %26, %27, %cst_14 {dimension_numbers = #tpu.dot_dimension_numbers<[1], [0], [0], [1], [0, 0, 1, 1], [], []>} : vector<16x64xf32>, vector<64x128xf32>, vector<16x128xf32> -> vector<16x128xf32>
    %29 = vector.shape_cast %28 : vector<16x128xf32> to vector<1x16x128xf32>
    %c0_15 = arith.constant 0 : index
    %c0_16 = arith.constant 0 : index
    %30 = vector.load %arg5[%c0_15, %c0_16] : memref<1x128xf32, #tpu.memory_space<vmem>>, vector<1x128xf32>
    %31 = vector.shape_cast %30 : vector<1x128xf32> to vector<1x1x128xf32>
    %32 = vector.broadcast %31 : vector<1x1x128xf32> to vector<1x16x128xf32>
    %33 = arith.addf %29, %32 : vector<1x16x128xf32>
    %cst_17 = arith.constant dense<0.000000e+00> : vector<1x128xf32>
    %34 = vector.multi_reduction <add>, %33, %cst_17 [1] : vector<1x16x128xf32> to vector<1x128xf32>
    %35 = vector.shape_cast %34 : vector<1x128xf32> to vector<1x1x128xf32>
    %cst_18 = arith.constant 1.600000e+01 : f32
    %36 = vector.broadcast %cst_18 : f32 to vector<1x1x128xf32>
    %37 = arith.divf %35, %36 : vector<1x1x128xf32>
    %38 = vector.broadcast %37 : vector<1x1x128xf32> to vector<1x16x128xf32>
    %39 = arith.subf %33, %38 : vector<1x16x128xf32>
    %40 = arith.mulf %39, %39 : vector<1x16x128xf32>
    %cst_19 = arith.constant dense<0.000000e+00> : vector<1x128xf32>
    %41 = vector.multi_reduction <add>, %40, %cst_19 [1] : vector<1x16x128xf32> to vector<1x128xf32>
    %42 = vector.shape_cast %41 : vector<1x128xf32> to vector<1x1x128xf32>
    %cst_20 = arith.constant 1.600000e+01 : f32
    %43 = vector.broadcast %cst_20 : f32 to vector<1x1x128xf32>
    %44 = arith.divf %42, %43 : vector<1x1x128xf32>
    %45 = vector.broadcast %37 : vector<1x1x128xf32> to vector<1x16x128xf32>
    %46 = arith.subf %33, %45 : vector<1x16x128xf32>
    %cst_21 = arith.constant 9.99999974E-6 : f32
    %47 = vector.broadcast %cst_21 : f32 to vector<1x1x128xf32>
    %48 = arith.addf %44, %47 : vector<1x1x128xf32>
    %49 = math.rsqrt %48 : vector<1x1x128xf32>
    %50 = vector.broadcast %49 : vector<1x1x128xf32> to vector<1x16x128xf32>
    %51 = arith.mulf %46, %50 : vector<1x16x128xf32>
    %cst_22 = arith.constant 0.000000e+00 : f32
    %52 = vector.broadcast %cst_22 : f32 to vector<1x16x128xf32>
    %53 = arith.maximumf %51, %52 : vector<1x16x128xf32>
    %54 = vector.shape_cast %53 : vector<1x16x128xf32> to vector<16x128xf32>
    %c0_23 = arith.constant 0 : index
    %c0_24 = arith.constant 0 : index
    %55 = vector.load %arg6[%c0_23, %c0_24] : memref<128x1024xf32, #tpu.memory_space<vmem>>, vector<128x1024xf32>
    %cst_25 = arith.constant dense<0.000000e+00> : vector<16x1024xf32>
    %56 = tpu.matmul %54, %55, %cst_25 {dimension_numbers = #tpu.dot_dimension_numbers<[1], [0], [0], [1], [0, 0, 1, 1], [], []>} : vector<16x128xf32>, vector<128x1024xf32>, vector<16x1024xf32> -> vector<16x1024xf32>
    %57 = vector.shape_cast %56 : vector<16x1024xf32> to vector<1x16x1024xf32>
    %cst_26 = arith.constant dense<0xFF800000> : vector<1x1024xf32>
    %58 = vector.multi_reduction <maximumf>, %57, %cst_26 [1] : vector<1x16x1024xf32> to vector<1x1024xf32>
    %cst_27 = arith.constant dense<0.000000e+00> : vector<1x1024xf32>
    %59 = vector.multi_reduction <add>, %57, %cst_27 [1] : vector<1x16x1024xf32> to vector<1x1024xf32>
    %60 = arith.mulf %57, %57 : vector<1x16x1024xf32>
    %cst_28 = arith.constant dense<0.000000e+00> : vector<1x1024xf32>
    %61 = vector.multi_reduction <add>, %60, %cst_28 [1] : vector<1x16x1024xf32> to vector<1x1024xf32>
    %cst_29 = arith.constant 6.250000e-02 : f32
    %62 = vector.broadcast %cst_29 : f32 to vector<1x1024xf32>
    %63 = arith.mulf %59, %62 : vector<1x1024xf32>
    %cst_30 = arith.constant 6.250000e-02 : f32
    %64 = vector.broadcast %cst_30 : f32 to vector<1x1024xf32>
    %65 = arith.mulf %61, %64 : vector<1x1024xf32>
    %66 = arith.mulf %63, %63 : vector<1x1024xf32>
    %67 = arith.subf %65, %66 : vector<1x1024xf32>
    %cst_31 = arith.constant 0.000000e+00 : f32
    %68 = vector.broadcast %cst_31 : f32 to vector<1x1024xf32>
    %69 = arith.maximumf %67, %68 : vector<1x1024xf32>
    %70 = arith.subf %58, %63 : vector<1x1024xf32>
    %cst_32 = arith.constant 9.99999974E-6 : f32
    %71 = vector.broadcast %cst_32 : f32 to vector<1x1024xf32>
    %72 = arith.addf %69, %71 : vector<1x1024xf32>
    %73 = math.rsqrt %72 : vector<1x1024xf32>
    %74 = arith.mulf %70, %73 : vector<1x1024xf32>
    %cst_33 = arith.constant 0.000000e+00 : f32
    %75 = vector.broadcast %cst_33 : f32 to vector<1x1024xf32>
    %76 = arith.maximumf %74, %75 : vector<1x1024xf32>
    %77 = vector.shape_cast %76 : vector<1x1024xf32> to vector<1x1x1024xf32>
    %c0_34 = arith.constant 0 : index
    %c0_35 = arith.constant 0 : index
    %c0_36 = arith.constant 0 : index
    %78 = vector.load %arg7[%c0_34, %c0_35, %c0_36] : memref<1x1x1024xf32, #tpu.memory_space<vmem>>, vector<1x1x1024xf32>
    tpu.vector_store %arg7[%c0_34, %c0_35, %c0_36], %77 {strides = array<i32>} : memref<1x1x1024xf32, #tpu.memory_space<vmem>>, vector<1x1x1024xf32>,
    return
  }
  func.func @transform_0(%arg0: i32) -> (i32, i32, i32) {
    %c0_i32 = arith.constant 0 : i32
    %c0_i32_0 = arith.constant 0 : i32
    %c0_i32_1 = arith.constant 0 : i32
    return %arg0, %c0_i32, %c0_i32_0 : i32, i32, i32
  }
  func.func @transform_1(%arg0: i32) -> (i32, i32) {
    %c0_i32 = arith.constant 0 : i32
    %c0_i32_0 = arith.constant 0 : i32
    %c0_i32_1 = arith.constant 0 : i32
    return %c0_i32, %c0_i32_0 : i32, i32
  }
  func.func @transform_2(%arg0: i32) -> (i32, i32) {
    %c0_i32 = arith.constant 0 : i32
    %c0_i32_0 = arith.constant 0 : i32
    %c0_i32_1 = arith.constant 0 : i32
    return %c0_i32, %c0_i32_0 : i32, i32
  }
  func.func @transform_3(%arg0: i32) -> (i32, i32) {
    %c0_i32 = arith.constant 0 : i32
    %c0_i32_0 = arith.constant 0 : i32
    %c0_i32_1 = arith.constant 0 : i32
    return %c0_i32, %c0_i32_0 : i32, i32
  }
  func.func @transform_4(%arg0: i32) -> (i32, i32) {
    %c0_i32 = arith.constant 0 : i32
    %c0_i32_0 = arith.constant 0 : i32
    %c0_i32_1 = arith.constant 0 : i32
    return %c0_i32, %c0_i32_0 : i32, i32
  }
  func.func @transform_5(%arg0: i32) -> (i32, i32) {
    %c0_i32 = arith.constant 0 : i32
    %c0_i32_0 = arith.constant 0 : i32
    %c0_i32_1 = arith.constant 0 : i32
    return %c0_i32, %c0_i32_0 : i32, i32
  }
  func.func @transform_6(%arg0: i32) -> (i32, i32, i32) {
    %c0_i32 = arith.constant 0 : i32
    %c0_i32_0 = arith.constant 0 : i32
    %c0_i32_1 = arith.constant 0 : i32
    return %arg0, %c0_i32, %c0_i32_0 : i32, i32, i32
  }
}

</mosaic_0001>

<llo_original>
// kernel: tpu_custom_call.1
$region0: #{tpu_custom_call.1}
  #allocation0 [shape = 'u32[]', space=smem, size = 0x4, offset = 0x4, fixed_abs, tag = 'smem constant byte address 0x4 - core index']
  #allocation1 [shape = 'u32[144,128]{1,0:T(1,128)}', space=vmem, size = 0x12000, scoped, tag = 'internal scratch']
  %s0 = inlined_call_operand.hbm [shape: f32[2,8,16], index: 0, kind: input, shape index: {}]
  %s1 = inlined_call_operand.hbm [shape: f32[8,64], index: 1, kind: input, shape index: {}]
  %s2 = inlined_call_operand.vmem [shape: f32[1,64], index: 2, kind: input, shape index: {}]
  %s3 = inlined_call_operand.hbm [shape: f32[64,128], index: 3, kind: input, shape index: {}]
  %s4 = inlined_call_operand.vmem [shape: f32[1,128], index: 4, kind: input, shape index: {}]
  %s5 = inlined_call_operand.hbm [shape: f32[128,1024], index: 5, kind: input, shape index: {}]
  %s6 = inlined_call_operand.hbm [shape: f32[2,1,1024], index: 6, kind: output, shape index: {}]
  %s7 = sld [smem:[#allocation0]]
  $region73: #{tpu_custom_call.1} parent=0
    _
  %s9 = ssub.s32 1, %s7
  %s10 = scalar_select 0, %s9, %s7
  $region1: #{tpu_custom_call.1} parent=0
    #allocation2 [shape = 'u8[8192]{0}', space=vmem, size = 0x2000, scoped, tag = 'input window, operand 0']
    #allocation3 [shape = 's32[2]{0}', space=sflag, size = 0x8, scoped, tag = 'scoped memory for tpu_custom_call.1']
    #allocation4 [shape = 's32[2]{0}', space=sflag, size = 0x8, scoped, tag = 'scoped memory for tpu_custom_call.1']
    #allocation5 [shape = 'u8[4096]{0}', space=vmem, size = 0x1000, scoped, tag = 'input window, operand 1, single buffered']
    #allocation6 [shape = 's32[1]{0}', space=sflag, size = 0x4, scoped, tag = 'scoped memory for tpu_custom_call.1']
    #allocation7 [shape = 'u8[32768]{0}', space=vmem, size = 0x8000, scoped, tag = 'input window, operand 3, single buffered']
    #allocation8 [shape = 'u8[524288]{0}', space=vmem, size = 0x80000, scoped, tag = 'input window, operand 5, single buffered']
    #allocation9 [shape = 's32[1]{0}', space=sflag, size = 0x4, scoped, tag = 'scoped memory for tpu_custom_call.1']
    #allocation10 [shape = 'u8[8192]{0}', space=vmem, size = 0x2000, scoped, tag = 'output window, operand 0']
    %11 = vsyncpa [#allocation3], 0
    %s12 = scalar_lea.sflag [#allocation3], 1
    %13 = vsyncpa %s12, 0
    %14 = vsyncpa [#allocation6], 0
    %15 = vsyncpa [#allocation9], 0
    %16 = vsyncpa [#allocation4], 0
    %s17 = scalar_lea.sflag [#allocation4], 1
    %18 = vsyncpa %s17, 0
    loop: start=0, step=1, limit=4
    $region2: #{tpu_custom_call.1} parent=1 // loop_pre_header
      _
    $region3: #{tpu_custom_call.1} parent=1 // loop_header
      %s20 = sphi 0, %s24
      %p21 = scmp.ge.s32.totalorder %s20, 4
      %s30 = sphi 0, %s32
      %s33 = sphi 0, %s30
      %s34 = sphi 0, %s33
      %s50 = sphi 0, %s34
      %s54 = sphi 0, %s54
      %s56 = sphi 0, %s54
      %s57 = sphi 0, %s56
      %s71 = sphi 0, %s57
      %s75 = sphi 0, %s75
      %s77 = sphi 0, %s75
      %s78 = sphi 0, %s77
      %s92 = sphi 0, %s78
      %s96 = sphi 0, %s96
      %s98 = sphi 0, %s96
      %s99 = sphi 0, %s98
      %s113 = sphi 0, %s99
      %s117 = sphi 0, %s117
      %s119 = sphi 0, %s117
      %s120 = sphi 0, %s119
      %s134 = sphi 0, %s120
      %s138 = sphi 0, %s138
      %s140 = sphi 0, %s138
      %s141 = sphi 0, %s140
      %s155 = sphi 0, %s141
      %s161 = sphi 0, %s163
      %s164 = sphi 0, %s161
      %s165 = sphi 0, %s164
      %s181 = sphi 0, %s165
    $region4: #{tpu_custom_call.1} parent=1 // loop_header_branch
      %23 = sbr.rel (%p21) target = $region8
    $region5: #{tpu_custom_call.1} parent=1 // loop_body
      %s25 = ssub.s32 %s20, 1
      %s26 = ssub.s32 %s20, 2
      %s27 = sadd.s32 %s20, 1
      %s28 = ssub.s32 %s20, %s27
      %p29 = scmp.eq.s32.totalorder %s28, 0
      %s31 = sadd.s32 %s30, 1
      %s32 = scalar_select %p29, %s30, %s31
      %p35 = pneg %p29
      %p36 = scmp.eq.s32.totalorder %s20, 1
      %p37 = por %p35, %p36
      %p38 = scmp.ne.s32.totalorder %s30, %s33
      %p39 = scmp.eq.s32.totalorder %s20, 0
      %p40 = por %p38, %p39
      %p41 = scmp.ne.s32.totalorder %s30, %s33
      %p42 = scmp.eq.s32.totalorder %s25, 1
      %p43 = por %p41, %p42
      %p44 = scmp.ne.s32.totalorder %s33, %s34
      %p45 = scmp.eq.s32.totalorder %s25, 0
      %p46 = por %p44, %p45
      %p47 = scmp.ne.s32.totalorder %s33, %s34
      %p48 = scmp.eq.s32.totalorder %s26, 1
      %p49 = por %p47, %p48
      %p51 = scmp.ne.s32.totalorder %s34, %s50
      %p52 = scmp.eq.s32.totalorder %s26, 0
      %p53 = por %p51, %p52
      %s55 = sadd.s32 %s54, 1
      %p58 = scmp.eq.s32.totalorder %s20, 1
      %p59 = scmp.ne.s32.totalorder %s54, %s56
      %p60 = scmp.eq.s32.totalorder %s20, 0
      %p61 = por %p59, %p60
      %p62 = scmp.ne.s32.totalorder %s54, %s56
      %p63 = scmp.eq.s32.totalorder %s25, 1
      %p64 = por %p62, %p63
      %p65 = scmp.ne.s32.totalorder %s56, %s57
      %p66 = scmp.eq.s32.totalorder %s25, 0
      %p67 = por %p65, %p66
      %p68 = scmp.ne.s32.totalorder %s56, %s57
      %p69 = scmp.eq.s32.totalorder %s26, 1
      %p70 = por %p68, %p69
      %p72 = scmp.ne.s32.totalorder %s57, %s71
      %p73 = scmp.eq.s32.totalorder %s26, 0
      %p74 = por %p72, %p73
      %s76 = sadd.s32 %s75, 1
      %p79 = scmp.eq.s32.totalorder %s20, 1
      %p80 = scmp.ne.s32.totalorder %s75, %s77
      %p81 = scmp.eq.s32.totalorder %s20, 0
      %p82 = por %p80, %p81
      %p83 = scmp.ne.s32.totalorder %s75, %s77
      %p84 = scmp.eq.s32.totalorder %s25, 1
      %p85 = por %p83, %p84
      %p86 = scmp.ne.s32.totalorder %s77, %s78
      %p87 = scmp.eq.s32.totalorder %s25, 0
      %p88 = por %p86, %p87
      %p89 = scmp.ne.s32.totalorder %s77, %s78
      %p90 = scmp.eq.s32.totalorder %s26, 1
      %p91 = por %p89, %p90
      %p93 = scmp.ne.s32.totalorder %s78, %s92
      %p94 = scmp.eq.s32.totalorder %s26, 0
      %p95 = por %p93, %p94
      %s97 = sadd.s32 %s96, 1
      %p100 = scmp.eq.s32.totalorder %s20, 1
      %p101 = scmp.ne.s32.totalorder %s96, %s98
      %p102 = scmp.eq.s32.totalorder %s20, 0
      %p103 = por %p101, %p102
      %p104 = scmp.ne.s32.totalorder %s96, %s98
      %p105 = scmp.eq.s32.totalorder %s25, 1
      %p106 = por %p104, %p105
      %p107 = scmp.ne.s32.totalorder %s98, %s99
      %p108 = scmp.eq.s32.totalorder %s25, 0
      %p109 = por %p107, %p108
      %p110 = scmp.ne.s32.totalorder %s98, %s99
      %p111 = scmp.eq.s32.totalorder %s26, 1
      %p112 = por %p110, %p111
      %p114 = scmp.ne.s32.totalorder %s99, %s113
      %p115 = scmp.eq.s32.totalorder %s26, 0
      %p116 = por %p114, %p115
      %s118 = sadd.s32 %s117, 1
      %p121 = scmp.eq.s32.totalorder %s20, 1
      %p122 = scmp.ne.s32.totalorder %s117, %s119
      %p123 = scmp.eq.s32.totalorder %s20, 0
      %p124 = por %p122, %p123
      %p125 = scmp.ne.s32.totalorder %s117, %s119
      %p126 = scmp.eq.s32.totalorder %s25, 1
      %p127 = por %p125, %p126
      %p128 = scmp.ne.s32.totalorder %s119, %s120
      %p129 = scmp.eq.s32.totalorder %s25, 0
      %p130 = por %p128, %p129
      %p131 = scmp.ne.s32.totalorder %s119, %s120
      %p132 = scmp.eq.s32.totalorder %s26, 1
      %p133 = por %p131, %p132
      %p135 = scmp.ne.s32.totalorder %s120, %s134
      %p136 = scmp.eq.s32.totalorder %s26, 0
      %p137 = por %p135, %p136
      %s139 = sadd.s32 %s138, 1
      %p142 = scmp.eq.s32.totalorder %s20, 1
      %p143 = scmp.ne.s32.totalorder %s138, %s140
      %p144 = scmp.eq.s32.totalorder %s20, 0
      %p145 = por %p143, %p144
      %p146 = scmp.ne.s32.totalorder %s138, %s140
      %p147 = scmp.eq.s32.totalorder %s25, 1
      %p148 = por %p146, %p147
      %p149 = scmp.ne.s32.totalorder %s140, %s141
      %p150 = scmp.eq.s32.totalorder %s25, 0
      %p151 = por %p149, %p150
      %p152 = scmp.ne.s32.totalorder %s140, %s141
      %p153 = scmp.eq.s32.totalorder %s26, 1
      %p154 = por %p152, %p153
      %p156 = scmp.ne.s32.totalorder %s141, %s155
      %p157 = scmp.eq.s32.totalorder %s26, 0
      %p158 = por %p156, %p157
      %s159 = ssub.s32 %s20, %s27
      %p160 = scmp.eq.s32.totalorder %s159, 0
      %s162 = sadd.s32 %s161, 1
      %s163 = scalar_select %p160, %s161, %s162
      %p166 = pneg %p160
      %p167 = scmp.eq.s32.totalorder %s20, 1
      %p168 = por %p166, %p167
      %p169 = scmp.ne.s32.totalorder %s161, %s164
      %p170 = scmp.eq.s32.totalorder %s20, 0
      %p171 = por %p169, %p170
      %p172 = scmp.ne.s32.totalorder %s161, %s164
      %p173 = scmp.eq.s32.totalorder %s25, 1
      %p174 = por %p172, %p173
      %p175 = scmp.ne.s32.totalorder %s164, %s165
      %p176 = scmp.eq.s32.totalorder %s25, 0
      %p177 = por %p175, %p176
      %p178 = scmp.ne.s32.totalorder %s164, %s165
      %p179 = scmp.eq.s32.totalorder %s26, 1
      %p180 = por %p178, %p179
      %p182 = scmp.ne.s32.totalorder %s165, %s181
      %p183 = scmp.eq.s32.totalorder %s26, 0
      %p184 = por %p182, %p183
      %p185 = scmp.le.s32.totalorder 1, %s20
      %p186 = scmp.lt.s32.totalorder %s20, 3
      %p187 = pnand %p185, %p186
      %p188 = pneg %p187
      // Predicated region
      $region9: #{tpu_custom_call.1} parent=5 // pred_check
        _
      $region10: #{tpu_custom_call.1} parent=5 // pred_check_branch
        %190 = sbr.rel (%p187) target = $region12
      $region11: #{tpu_custom_call.1} parent=5 // pred_region
        %s191 = ssub.s32 %s20, 1
        // Predicated region
        $region13: #{tpu_custom_call.1} parent=11 // pred_check
          %p192 = pneg %p67
        $region14: #{tpu_custom_call.1} parent=11 // pred_check_branch
          %194 = sbr.rel (%p192) target = $region16
        $region15: #{tpu_custom_call.1} parent=11 // pred_region
          %s196 = ssub.s32 128, 128
          %197 = vsyncadd [#allocation6], %s196
          %s199 = sshll.u32 [#allocation5], 4
          %s200 = int_to_ptr.vmem [resolvable:$true] %s199
          %202 = dma.hbm_to_vmem [thread:$0]  %s1, 128, %s200, [#allocation6]
        $region16: #{tpu_custom_call.1} parent=11 // pred_fallthru
          _
        // Predicated region
        $region17: #{tpu_custom_call.1} parent=11 // pred_check
          %p203 = pneg %p88
        $region18: #{tpu_custom_call.1} parent=11 // pred_check_branch
          %205 = sbr.rel (%p203) target = $region20
        $region19: #{tpu_custom_call.1} parent=11 // pred_region
          _
        $region20: #{tpu_custom_call.1} parent=11 // pred_fallthru
          _
        // Predicated region
        $region21: #{tpu_custom_call.1} parent=11 // pred_check
          %p206 = pneg %p109
        $region22: #{tpu_custom_call.1} parent=11 // pred_check_branch
          %208 = sbr.rel (%p206) target = $region24
        $region23: #{tpu_custom_call.1} parent=11 // pred_region
          %s210 = ssub.s32 1024, 1024
          %211 = vsyncadd [#allocation6], %s210
          %s212 = sshll.u32 [#allocation7], 4
          %s213 = int_to_ptr.vmem [resolvable:$true] %s212
          %218 = dma.hbm_to_vmem [thread:$0]  %s3, 1024, %s213, [#allocation6], 128, 128, 8
        $region24: #{tpu_custom_call.1} parent=11 // pred_fallthru
          _
        // Predicated region
        $region25: #{tpu_custom_call.1} parent=11 // pred_check
          %p219 = pneg %p130
        $region26: #{tpu_custom_call.1} parent=11 // pred_check_branch
          %221 = sbr.rel (%p219) target = $region28
        $region27: #{tpu_custom_call.1} parent=11 // pred_region
          _
        $region28: #{tpu_custom_call.1} parent=11 // pred_fallthru
          _
        // Predicated region
        $region29: #{tpu_custom_call.1} parent=11 // pred_check
          %p222 = pneg %p151
        $region30: #{tpu_custom_call.1} parent=11 // pred_check_branch
          %224 = sbr.rel (%p222) target = $region32
        $region31: #{tpu_custom_call.1} parent=11 // pred_region
          %s226 = ssub.s32 16384, 16384
          %227 = vsyncadd [#allocation9], %s226
          %s228 = sshll.u32 [#allocation8], 4
          %s229 = int_to_ptr.vmem [resolvable:$true] %s228
          %234 = dma.hbm_to_vmem [thread:$0]  %s5, 16384, %s229, [#allocation9], 1024, 1024, 64
        $region32: #{tpu_custom_call.1} parent=11 // pred_fallthru
          _
      $region12: #{tpu_custom_call.1} parent=5 // pred_fallthru
        _
      %p235 = scmp.lt.s32.totalorder %s20, 2
      // Predicated region
      $region33: #{tpu_custom_call.1} parent=5 // pred_check
        %p236 = pneg %p235
      $region34: #{tpu_custom_call.1} parent=5 // pred_check_branch
        %238 = sbr.rel (%p236) target = $region36
      $region35: #{tpu_custom_call.1} parent=5 // pred_region
        // Predicated region
        $region37: #{tpu_custom_call.1} parent=35 // pred_check
          %p239 = pneg %p40
        $region38: #{tpu_custom_call.1} parent=35 // pred_check_branch
          %241 = sbr.rel (%p239) target = $region40
        $region39: #{tpu_custom_call.1} parent=35 // pred_region
          %s242 = sand.u32 %s30, 1
          %s243 = scalar_lea.sflag [#allocation3], %s242
          %s244 = sand.u32 %s30, 1
          %s245 = smul.addr %s244, 8
          %s246 = scalar_lea.vmem [#allocation2], %s245
          %s248 = ssub.s32 128, 128
          %249 = vsyncadd %s243, %s248
          %s250 = smul.addr %s20, 128
          %s251 = scalar_lea.hbm %s0, %s250
          %s253 = sshll.u32 %s246, 4
          %s254 = int_to_ptr.vmem [resolvable:$true] %s253
          %256 = dma.hbm_to_vmem [thread:$0]  %s251, 128, %s254, %s243
        $region40: #{tpu_custom_call.1} parent=35 // pred_fallthru
          _
      $region36: #{tpu_custom_call.1} parent=5 // pred_fallthru
        _
      %p257 = scmp.le.s32.totalorder 1, %s20
      %p258 = scmp.lt.s32.totalorder %s20, 3
      %p259 = pnand %p257, %p258
      %p260 = pneg %p259
      // Predicated region
      $region41: #{tpu_custom_call.1} parent=5 // pred_check
        _
      $region42: #{tpu_custom_call.1} parent=5 // pred_check_branch
        %262 = sbr.rel (%p259) target = $region44
      $region43: #{tpu_custom_call.1} parent=5 // pred_region
        %s263 = ssub.s32 %s20, 1
        %s264 = sand.u32 %s33, 1
        %s265 = scalar_lea.sflag [#allocation3], %s264
        %s266 = sand.u32 %s33, 1
        %s267 = smul.addr %s266, 8
        %s268 = scalar_lea.vmem [#allocation2], %s267
        // Predicated region
        $region45: #{tpu_custom_call.1} parent=43 // pred_check
          %p269 = pneg %p46
        $region46: #{tpu_custom_call.1} parent=43 // pred_check_branch
          %271 = sbr.rel (%p269) target = $region48
        $region47: #{tpu_custom_call.1} parent=43 // pred_region
          %272 = dma.done %s265, 128
        $region48: #{tpu_custom_call.1} parent=43 // pred_fallthru
          _
        // Predicated region
        $region49: #{tpu_custom_call.1} parent=43 // pred_check
          %p273 = pneg %p67
        $region50: #{tpu_custom_call.1} parent=43 // pred_check_branch
          %275 = sbr.rel (%p273) target = $region52
        $region51: #{tpu_custom_call.1} parent=43 // pred_region
          %276 = dma.done [#allocation6], 128
        $region52: #{tpu_custom_call.1} parent=43 // pred_fallthru
          _
        // Predicated region
        $region53: #{tpu_custom_call.1} parent=43 // pred_check
          %p277 = pneg %p109
        $region54: #{tpu_custom_call.1} parent=43 // pred_check_branch
          %279 = sbr.rel (%p277) target = $region56
        $region55: #{tpu_custom_call.1} parent=43 // pred_region
          %280 = dma.done [#allocation6], 1024
        $region56: #{tpu_custom_call.1} parent=43 // pred_fallthru
          _
        // Predicated region
        $region57: #{tpu_custom_call.1} parent=43 // pred_check
          %p281 = pneg %p151
        $region58: #{tpu_custom_call.1} parent=43 // pred_check_branch
          %283 = sbr.rel (%p281) target = $region60
        $region59: #{tpu_custom_call.1} parent=43 // pred_region
          %284 = dma.done [#allocation9], 16384
        $region60: #{tpu_custom_call.1} parent=43 // pred_fallthru
          _
        %s285 = sand.u32 %s33, 1
        %s286 = scalar_lea.sflag [#allocation3], %s285
        %s287 = sand.u32 %s33, 1
        %s288 = smul.addr %s287, 8
        %s289 = scalar_lea.vmem [#allocation2], %s288
        %p290 = pneg %p46
        %p291 = pneg %p43
        %p292 = pneg %p67
        %p293 = pneg %p64
        %p294 = pneg %p88
        %p295 = pneg %p85
        %p296 = pneg %p109
        %p297 = pneg %p106
        %p298 = pneg %p130
        %p299 = pneg %p127
        %p300 = pneg %p151
        %p301 = pneg %p148
        %p302 = pneg %p177
        %p303 = pneg %p174
        %s304 = sand.u32 %s164, 1
        %s305 = scalar_lea.sflag [#allocation4], %s304
        %s306 = sand.u32 %s164, 1
        %s307 = smul.addr %s306, 8
        %s308 = scalar_lea.vmem [#allocation10], %s307
        %v309 = vld [vmem:[%s268] sm:$0xff]
        %v310 = vld [vmem:[#allocation5] sm:$0xff]
        %v311 = vld [vmem:[%s2] sm:$0x1]
        %v313 = vlaneseq
        %v314 = vshrl.u32 %v313, 7
        %v315 = vsub.s32 0, %v314
        %v316 = vrot.slane %v311, %v315
        %318 = vxpose.xlu0.b32.start [1/16] %v309, 128
        %319 = vxpose.xlu0.b32.cont [2/16] 0.0, 128
        %320 = vxpose.xlu0.b32.cont [3/16] 0.0, 128
        %321 = vxpose.xlu0.b32.cont [4/16] 0.0, 128
        %322 = vxpose.xlu0.b32.cont [5/16] 0.0, 128
        %323 = vxpose.xlu0.b32.cont [6/16] 0.0, 128
        %324 = vxpose.xlu0.b32.cont [7/16] 0.0, 128
        %325 = vxpose.xlu0.b32.cont [8/16] 0.0, 128
        %326 = vxpose.xlu0.b32.cont [9/16] 0.0, 128
        %327 = vxpose.xlu0.b32.cont [10/16] 0.0, 128
        %328 = vxpose.xlu0.b32.cont [11/16] 0.0, 128
        %329 = vxpose.xlu0.b32.cont [12/16] 0.0, 128
        %330 = vxpose.xlu0.b32.cont [13/16] 0.0, 128
        %331 = vxpose.xlu0.b32.cont [14/16] 0.0, 128
        %332 = vxpose.xlu0.b32.cont [15/16] 0.0, 128
        %333 = vxpose.xlu0.b32.end [16/16] 0.0, 128
        %v334 = vpop.trf.xlu0
        %v335 = vpop.trf.xlu0
        %v336 = vpop.trf.xlu0
        %v337 = vpop.trf.xlu0
        %v338 = vpop.trf.xlu0
        %v339 = vpop.trf.xlu0
        %v340 = vpop.trf.xlu0
        %v341 = vpop.trf.xlu0
        %v342 = vpop.trf.xlu0
        %v343 = vpop.trf.xlu0
        %v344 = vpop.trf.xlu0
        %v345 = vpop.trf.xlu0
        %v346 = vpop.trf.xlu0
        %v347 = vpop.trf.xlu0
        %v348 = vpop.trf.xlu0
        %v349 = vpop.trf.xlu0
        %vm350 = vcmask 64512
        %v352 = vsel %vm350, %v334, 0
        %v355 = vsel %vm350, %v335, 0
        %357 = vmatprep.subr.mxu0 0.0
        %358 = vmatpush1.msra.mxu0 0.0
        %359 = vmatprep.subr.mxu0 0.0
        %360 = vmatpush1.msra.mxu0 0.0
        %361 = vmatprep.subr.mxu0 0.0
        %362 = vmatpush1.msra.mxu0 0.0
        %363 = vmatprep.subr.mxu0 0.0
        %364 = vmatpush1.msra.mxu0 0.0
        %365 = vmatprep.subr.mxu0 0.0
        %366 = vmatpush1.msra.mxu0 0.0
        %367 = vmatprep.subr.mxu0 0.0
        %368 = vmatpush1.msra.mxu0 0.0
        %369 = vmatprep.subr.mxu0 0.0
        %370 = vmatpush1.msra.mxu0 0.0
        %371 = vmatprep.subr.mxu0 0.0
        %372 = vmatpush1.msra.mxu0 0.0
        %373 = vmatprep.subr.mxu0 0.0
        %374 = vmatpush1.msra.mxu0 0.0
        %375 = vmatprep.subr.mxu0 0.0
        %376 = vmatpush1.msra.mxu0 0.0
        %377 = vmatprep.subr.mxu0 0.0
        %378 = vmatpush1.msra.mxu0 0.0
        %379 = vmatprep.subr.mxu0 0.0
        %380 = vmatpush1.msra.mxu0 0.0
        %381 = vmatprep.subr.mxu0 0.0
        %382 = vmatpush1.msra.mxu0 0.0
        %383 = vmatprep.subr.mxu0 0.0
        %384 = vmatpush1.msra.mxu0 0.0
        %385 = vmatprep.subr.mxu0 0.0
        %386 = vmatpush1.msra.mxu0 0.0
        %387 = vmatprep.subr.mxu0 0.0
        %388 = vmatpush1.msra.mxu0 %v310
        %389 = vmatprep.subr.mxu0 0.0
        %390 = vmatpush2.msra.mxu0 0.0
        %391 = vmatprep.subr.mxu0 0.0
        %392 = vmatpush2.msra.mxu0 0.0
        %393 = vmatprep.subr.mxu0 0.0
        %394 = vmatpush2.msra.mxu0 0.0
        %395 = vmatprep.subr.mxu0 0.0
        %396 = vmatpush2.msra.mxu0 0.0
        %397 = vmatprep.subr.mxu0 0.0
        %398 = vmatpush2.msra.mxu0 0.0
        %399 = vmatprep.subr.mxu0 0.0
        %400 = vmatpush2.msra.mxu0 0.0
        %401 = vmatprep.subr.mxu0 0.0
        %402 = vmatpush2.msra.mxu0 0.0
        %403 = vmatprep.subr.mxu0 0.0
        %404 = vmatpush2.msra.mxu0 0.0
        %405 = vmatprep.subr.mxu0 0.0
        %406 = vmatpush2.msra.mxu0 0.0
        %407 = vmatprep.subr.mxu0 0.0
        %408 = vmatpush2.msra.mxu0 0.0
        %409 = vmatprep.subr.mxu0 0.0
        %410 = vmatpush2.msra.mxu0 0.0
        %411 = vmatprep.subr.mxu0 0.0
        %412 = vmatpush2.msra.mxu0 0.0
        %413 = vmatprep.subr.mxu0 0.0
        %414 = vmatpush2.msra.mxu0 0.0
        %415 = vmatprep.subr.mxu0 0.0
        %416 = vmatpush2.msra.mxu0 0.0
        %417 = vmatprep.subr.mxu0 0.0
        %418 = vmatpush2.msra.mxu0 0.0
        %419 = vmatprep.subr.mxu0 0.0
        %420 = vmatpush2.msra.mxu0 0.0
        %421 = vmatprep.mubr.f32.mxu0 0.0
        %422 = vmatmul.mubr.f32.gmra.mxu0 %v352
        %v423 = vpop.f32.mrf.mxu0
        %v424 = vadd.f32 %v316, %v423
        %v425 = vpop.f32.mrf.mxu0
        %426 = vmatprep.mubr.f32.mxu0 0.0
        %427 = vmatmul.mubr.f32.gmra.mxu0 %v355
        %v428 = vpop.f32.mrf.mxu0
        %v429 = vadd.f32 %v316, %v428
        %v430 = vpop.f32.mrf.mxu0
        %431 = vdwg.mxu0
        %vm432 = vcmask 523264
        %v433 = vsel %vm432, %v424, 0.0
        %v434 = vsel %vm432, %v429, 0.0
        %v435 = vadd.f32 %v433, %v434
        %v436 = vrot.slane %v435, 4
        %v437 = vadd.f32 %v435, %v436
        %v438 = vrot.slane %v437, 2
        %v439 = vadd.f32 %v437, %v438
        %v440 = vrot.slane %v439, 1
        %v441 = vadd.f32 %v439, %v440
        %v442 = vrcp.pop 16.0
        %v443 = vmul.f32 %v441, %v442
        %v444 = vsub.f32 %v424, %v443
        %v445 = vsub.f32 %v429, %v443
        %v446 = vmul.f32 %v444, %v444
        %v447 = vmul.f32 %v445, %v445
        %v448 = vsel %vm432, %v446, 0.0
        %v449 = vsel %vm432, %v447, 0.0
        %v450 = vadd.f32 %v448, %v449
        %v451 = vrot.slane %v450, 4
        %v452 = vadd.f32 %v450, %v451
        %v453 = vrot.slane %v452, 2
        %v454 = vadd.f32 %v452, %v453
        %v455 = vrot.slane %v454, 1
        %v456 = vadd.f32 %v454, %v455
        %v457 = vmul.f32 %v456, %v442
        %v458 = vadd.f32 %v457, 1e-05
        %v459 = vrsqrt.pop %v458
        %v460 = vmul.f32 %v444, %v459
        %v461 = vmul.f32 %v445, %v459
        %v462 = vmax.f32 %v460, 0.0
        %v463 = vmax.f32 %v461, 0.0
        %v464 = vld [vmem:[#allocation7] sm:$0xff]
        %v465 = vld [vmem:[#allocation7 + $0x8] sm:$0xff]
        %v466 = vld [vmem:[#allocation7 + $0x10] sm:$0xff]
        %v467 = vld [vmem:[#allocation7 + $0x18] sm:$0xff]
        %v468 = vld [vmem:[#allocation7 + $0x20] sm:$0xff]
        %v469 = vld [vmem:[#allocation7 + $0x28] sm:$0xff]
        %v470 = vld [vmem:[#allocation7 + $0x30] sm:$0xff]
        %v471 = vld [vmem:[#allocation7 + $0x38] sm:$0xff]
        %v473 = vsel %vm432, %v462, 0
        %v476 = vsel %vm432, %v463, 0
        %478 = vmatprep.subr.mxu0 0.0
        %479 = vmatpush1.msra.mxu0 0.0
        %480 = vmatprep.subr.mxu0 0.0
        %481 = vmatpush1.msra.mxu0 0.0
        %482 = vmatprep.subr.mxu0 0.0
        %483 = vmatpush1.msra.mxu0 0.0
        %484 = vmatprep.subr.mxu0 0.0
        %485 = vmatpush1.msra.mxu0 0.0
        %486 = vmatprep.subr.mxu0 0.0
        %487 = vmatpush1.msra.mxu0 0.0
        %488 = vmatprep.subr.mxu0 0.0
        %489 = vmatpush1.msra.mxu0 0.0
        %490 = vmatprep.subr.mxu0 0.0
        %491 = vmatpush1.msra.mxu0 0.0
        %492 = vmatprep.subr.mxu0 0.0
        %493 = vmatpush1.msra.mxu0 0.0
        %494 = vmatprep.subr.mxu0 0.0
        %495 = vmatpush1.msra.mxu0 %v471
        %496 = vmatprep.subr.mxu0 0.0
        %497 = vmatpush1.msra.mxu0 %v470
        %498 = vmatprep.subr.mxu0 0.0
        %499 = vmatpush1.msra.mxu0 %v469
        %500 = vmatprep.subr.mxu0 0.0
        %501 = vmatpush1.msra.mxu0 %v468
        %502 = vmatprep.subr.mxu0 0.0
        %503 = vmatpush1.msra.mxu0 %v467
        %504 = vmatprep.subr.mxu0 0.0
        %505 = vmatpush1.msra.mxu0 %v466
        %506 = vmatprep.subr.mxu0 0.0
        %507 = vmatpush1.msra.mxu0 %v465
        %508 = vmatprep.subr.mxu0 0.0
        %509 = vmatpush1.msra.mxu0 %v464
        %510 = vmatprep.subr.mxu0 0.0
        %511 = vmatpush2.msra.mxu0 0.0
        %512 = vmatprep.subr.mxu0 0.0
        %513 = vmatpush2.msra.mxu0 0.0
        %514 = vmatprep.subr.mxu0 0.0
        %515 = vmatpush2.msra.mxu0 0.0
        %516 = vmatprep.subr.mxu0 0.0
        %517 = vmatpush2.msra.mxu0 0.0
        %518 = vmatprep.subr.mxu0 0.0
        %519 = vmatpush2.msra.mxu0 0.0
        %520 = vmatprep.subr.mxu0 0.0
        %521 = vmatpush2.msra.mxu0 0.0
        %522 = vmatprep.subr.mxu0 0.0
        %523 = vmatpush2.msra.mxu0 0.0
        %524 = vmatprep.subr.mxu0 0.0
        %525 = vmatpush2.msra.mxu0 0.0
        %526 = vmatprep.subr.mxu0 0.0
        %527 = vmatpush2.msra.mxu0 0.0
        %528 = vmatprep.subr.mxu0 0.0
        %529 = vmatpush2.msra.mxu0 0.0
        %530 = vmatprep.subr.mxu0 0.0
        %531 = vmatpush2.msra.mxu0 0.0
        %532 = vmatprep.subr.mxu0 0.0
        %533 = vmatpush2.msra.mxu0 0.0
        %534 = vmatprep.subr.mxu0 0.0
        %535 = vmatpush2.msra.mxu0 0.0
        %536 = vmatprep.subr.mxu0 0.0
        %537 = vmatpush2.msra.mxu0 0.0
        %538 = vmatprep.subr.mxu0 0.0
        %539 = vmatpush2.msra.mxu0 0.0
        %540 = vmatprep.subr.mxu0 0.0
        %541 = vmatpush2.msra.mxu0 0.0
        %542 = vmatprep.mubr.f32.mxu0 0.0
        %543 = vmatmul.mubr.f32.gmra.mxu0 %v473
        %v544 = vpop.f32.mrf.mxu0
        %v545 = vadd.f32 0.0, %v544
        %v546 = vpop.f32.mrf.mxu0
        %547 = vmatprep.mubr.f32.mxu0 0.0
        %548 = vmatmul.mubr.f32.gmra.mxu0 %v476
        %v549 = vpop.f32.mrf.mxu0
        %v550 = vadd.f32 0.0, %v549
        %v551 = vpop.f32.mrf.mxu0
        %552 = vdwg.mxu0
        %v553 = vld [vmem:[%s4] sm:$0x1]
        %v555 = vlaneseq
        %v556 = vshrl.u32 %v555, 7
        %v557 = vsub.s32 0, %v556
        %v558 = vrot.slane %v553, %v557
        %v560 = vadd.f32 %v545, %v558
        %v561 = vadd.f32 %v550, %v558
        %v562 = vadd.f32 %v560, %v561
        %v563 = vrot.slane %v562, 4
        %v564 = vadd.f32 %v562, %v563
        %v565 = vrot.slane %v564, 2
        %v566 = vadd.f32 %v564, %v565
        %v567 = vrot.slane %v566, 1
        %v568 = vadd.f32 %v566, %v567
        %v569 = vmul.f32 %v568, %v442
        %v570 = vsub.f32 %v560, %v569
        %v571 = vsub.f32 %v561, %v569
        %v572 = vmul.f32 %v570, %v570
        %v573 = vmul.f32 %v571, %v571
        %v574 = vadd.f32 %v572, %v573
        %v575 = vrot.slane %v574, 4
        %v576 = vadd.f32 %v574, %v575
        %v577 = vrot.slane %v576, 2
        %v578 = vadd.f32 %v576, %v577
        %v579 = vrot.slane %v578, 1
        %v580 = vadd.f32 %v578, %v579
        %v581 = vmul.f32 %v580, %v442
        %v582 = vadd.f32 %v581, 1e-05
        %v583 = vrsqrt.pop %v582
        %v584 = vmul.f32 %v570, %v583
        %v585 = vmul.f32 %v571, %v583
        %v586 = vmax.f32 %v584, 0.0
        %v587 = vmax.f32 %v585, 0.0
        %v588 = vld [vmem:[#allocation8] sm:$0xff]
        %v589 = vld [vmem:[#allocation8 + $0x8] sm:$0xff]
        %v590 = vld [vmem:[#allocation8 + $0x10] sm:$0xff]
        %v591 = vld [vmem:[#allocation8 + $0x18] sm:$0xff]
        %v592 = vld [vmem:[#allocation8 + $0x20] sm:$0xff]
        %v593 = vld [vmem:[#allocation8 + $0x28] sm:$0xff]
        %v594 = vld [vmem:[#allocation8 + $0x30] sm:$0xff]
        %v595 = vld [vmem:[#allocation8 + $0x38] sm:$0xff]
        %v596 = vld [vmem:[#allocation8 + $0x40] sm:$0xff]
        %v597 = vld [vmem:[#allocation8 + $0x48] sm:$0xff]
        %v598 = vld [vmem:[#allocation8 + $0x50] sm:$0xff]
        %v599 = vld [vmem:[#allocation8 + $0x58] sm:$0xff]
        %v600 = vld [vmem:[#allocation8 + $0x60] sm:$0xff]
        %v601 = vld [vmem:[#allocation8 + $0x68] sm:$0xff]
        %v602 = vld [vmem:[#allocation8 + $0x70] sm:$0xff]
        %v603 = vld [vmem:[#allocation8 + $0x78] sm:$0xff]
        %v604 = vld [vmem:[#allocation8 + $0x80] sm:$0xff]
        %v605 = vld [vmem:[#allocation8 + $0x88] sm:$0xff]
        %v606 = vld [vmem:[#allocation8 + $0x90] sm:$0xff]
        %v607 = vld [vmem:[#allocation8 + $0x98] sm:$0xff]
        %v608 = vld [vmem:[#allocation8 + $0xa0] sm:$0xff]
        %v609 = vld [vmem:[#allocation8 + $0xa8] sm:$0xff]
        %v610 = vld [vmem:[#allocation8 + $0xb0] sm:$0xff]
        %v611 = vld [vmem:[#allocation8 + $0xb8] sm:$0xff]
        %v612 = vld [vmem:[#allocation8 + $0xc0] sm:$0xff]
        %v613 = vld [vmem:[#allocation8 + $0xc8] sm:$0xff]
        %v614 = vld [vmem:[#allocation8 + $0xd0] sm:$0xff]
        %v615 = vld [vmem:[#allocation8 + $0xd8] sm:$0xff]
        %v616 = vld [vmem:[#allocation8 + $0xe0] sm:$0xff]
        %v617 = vld [vmem:[#allocation8 + $0xe8] sm:$0xff]
        %v618 = vld [vmem:[#allocation8 + $0xf0] sm:$0xff]
        %v619 = vld [vmem:[#allocation8 + $0xf8] sm:$0xff]
        %v620 = vld [vmem:[#allocation8 + $0x100] sm:$0xff]
        %v621 = vld [vmem:[#allocation8 + $0x108] sm:$0xff]
        %v622 = vld [vmem:[#allocation8 + $0x110] sm:$0xff]
        %v623 = vld [vmem:[#allocation8 + $0x118] sm:$0xff]
        %v624 = vld [vmem:[#allocation8 + $0x120] sm:$0xff]
        %v625 = vld [vmem:[#allocation8 + $0x128] sm:$0xff]
        %v626 = vld [vmem:[#allocation8 + $0x130] sm:$0xff]
        %v627 = vld [vmem:[#allocation8 + $0x138] sm:$0xff]
        %v628 = vld [vmem:[#allocation8 + $0x140] sm:$0xff]
        %v629 = vld [vmem:[#allocation8 + $0x148] sm:$0xff]
        %v630 = vld [vmem:[#allocation8 + $0x150] sm:$0xff]
        %v631 = vld [vmem:[#allocation8 + $0x158] sm:$0xff]
        %v632 = vld [vmem:[#allocation8 + $0x160] sm:$0xff]
        %v633 = vld [vmem:[#allocation8 + $0x168] sm:$0xff]
        %v634 = vld [vmem:[#allocation8 + $0x170] sm:$0xff]
        %v635 = vld [vmem:[#allocation8 + $0x178] sm:$0xff]
        %v636 = vld [vmem:[#allocation8 + $0x180] sm:$0xff]
        %v637 = vld [vmem:[#allocation8 + $0x188] sm:$0xff]
        %v638 = vld [vmem:[#allocation8 + $0x190] sm:$0xff]
        %v639 = vld [vmem:[#allocation8 + $0x198] sm:$0xff]
        %v640 = vld [vmem:[#allocation8 + $0x1a0] sm:$0xff]
        %v641 = vld [vmem:[#allocation8 + $0x1a8] sm:$0xff]
        %v642 = vld [vmem:[#allocation8 + $0x1b0] sm:$0xff]
        %v643 = vld [vmem:[#allocation8 + $0x1b8] sm:$0xff]
        %v644 = vld [vmem:[#allocation8 + $0x1c0] sm:$0xff]
        %v645 = vld [vmem:[#allocation8 + $0x1c8] sm:$0xff]
        %v646 = vld [vmem:[#allocation8 + $0x1d0] sm:$0xff]
        %v647 = vld [vmem:[#allocation8 + $0x1d8] sm:$0xff]
        %v648 = vld [vmem:[#allocation8 + $0x1e0] sm:$0xff]
        %v649 = vld [vmem:[#allocation8 + $0x1e8] sm:$0xff]
        %v650 = vld [vmem:[#allocation8 + $0x1f0] sm:$0xff]
        %v651 = vld [vmem:[#allocation8 + $0x1f8] sm:$0xff]
        %v652 = vld [vmem:[#allocation8 + $0x200] sm:$0xff]
        %v653 = vld [vmem:[#allocation8 + $0x208] sm:$0xff]
        %v654 = vld [vmem:[#allocation8 + $0x210] sm:$0xff]
        %v655 = vld [vmem:[#allocation8 + $0x218] sm:$0xff]
        %v656 = vld [vmem:[#allocation8 + $0x220] sm:$0xff]
        %v657 = vld [vmem:[#allocation8 + $0x228] sm:$0xff]
        %v658 = vld [vmem:[#allocation8 + $0x230] sm:$0xff]
        %v659 = vld [vmem:[#allocation8 + $0x238] sm:$0xff]
        %v660 = vld [vmem:[#allocation8 + $0x240] sm:$0xff]
        %v661 = vld [vmem:[#allocation8 + $0x248] sm:$0xff]
        %v662 = vld [vmem:[#allocation8 + $0x250] sm:$0xff]
        %v663 = vld [vmem:[#allocation8 + $0x258] sm:$0xff]
        %v664 = vld [vmem:[#allocation8 + $0x260] sm:$0xff]
        %v665 = vld [vmem:[#allocation8 + $0x268] sm:$0xff]
        %v666 = vld [vmem:[#allocation8 + $0x270] sm:$0xff]
        %v667 = vld [vmem:[#allocation8 + $0x278] sm:$0xff]
        %v668 = vld [vmem:[#allocation8 + $0x280] sm:$0xff]
        %v669 = vld [vmem:[#allocation8 + $0x288] sm:$0xff]
        %v670 = vld [vmem:[#allocation8 + $0x290] sm:$0xff]
        %v671 = vld [vmem:[#allocation8 + $0x298] sm:$0xff]
        %v672 = vld [vmem:[#allocation8 + $0x2a0] sm:$0xff]
        %v673 = vld [vmem:[#allocation8 + $0x2a8] sm:$0xff]
        %v674 = vld [vmem:[#allocation8 + $0x2b0] sm:$0xff]
        %v675 = vld [vmem:[#allocation8 + $0x2b8] sm:$0xff]
        %v676 = vld [vmem:[#allocation8 + $0x2c0] sm:$0xff]
        %v677 = vld [vmem:[#allocation8 + $0x2c8] sm:$0xff]
        %v678 = vld [vmem:[#allocation8 + $0x2d0] sm:$0xff]
        %v679 = vld [vmem:[#allocation8 + $0x2d8] sm:$0xff]
        %v680 = vld [vmem:[#allocation8 + $0x2e0] sm:$0xff]
        %v681 = vld [vmem:[#allocation8 + $0x2e8] sm:$0xff]
        %v682 = vld [vmem:[#allocation8 + $0x2f0] sm:$0xff]
        %v683 = vld [vmem:[#allocation8 + $0x2f8] sm:$0xff]
        %v684 = vld [vmem:[#allocation8 + $0x300] sm:$0xff]
        %v685 = vld [vmem:[#allocation8 + $0x308] sm:$0xff]
        %v686 = vld [vmem:[#allocation8 + $0x310] sm:$0xff]
        %v687 = vld [vmem:[#allocation8 + $0x318] sm:$0xff]
        %v688 = vld [vmem:[#allocation8 + $0x320] sm:$0xff]
        %v689 = vld [vmem:[#allocation8 + $0x328] sm:$0xff]
        %v690 = vld [vmem:[#allocation8 + $0x330] sm:$0xff]
        %v691 = vld [vmem:[#allocation8 + $0x338] sm:$0xff]
        %v692 = vld [vmem:[#allocation8 + $0x340] sm:$0xff]
        %v693 = vld [vmem:[#allocation8 + $0x348] sm:$0xff]
        %v694 = vld [vmem:[#allocation8 + $0x350] sm:$0xff]
        %v695 = vld [vmem:[#allocation8 + $0x358] sm:$0xff]
        %v696 = vld [vmem:[#allocation8 + $0x360] sm:$0xff]
        %v697 = vld [vmem:[#allocation8 + $0x368] sm:$0xff]
        %v698 = vld [vmem:[#allocation8 + $0x370] sm:$0xff]
        %v699 = vld [vmem:[#allocation8 + $0x378] sm:$0xff]
        %v700 = vld [vmem:[#allocation8 + $0x380] sm:$0xff]
        %v701 = vld [vmem:[#allocation8 + $0x388] sm:$0xff]
        %v702 = vld [vmem:[#allocation8 + $0x390] sm:$0xff]
        %v703 = vld [vmem:[#allocation8 + $0x398] sm:$0xff]
        %v704 = vld [vmem:[#allocation8 + $0x3a0] sm:$0xff]
        %v705 = vld [vmem:[#allocation8 + $0x3a8] sm:$0xff]
        %v706 = vld [vmem:[#allocation8 + $0x3b0] sm:$0xff]
        %v707 = vld [vmem:[#allocation8 + $0x3b8] sm:$0xff]
        %v708 = vld [vmem:[#allocation8 + $0x3c0] sm:$0xff]
        %v709 = vld [vmem:[#allocation8 + $0x3c8] sm:$0xff]
        %v710 = vld [vmem:[#allocation8 + $0x3d0] sm:$0xff]
        %v711 = vld [vmem:[#allocation8 + $0x3d8] sm:$0xff]
        %v712 = vld [vmem:[#allocation8 + $0x3e0] sm:$0xff]
        %v713 = vld [vmem:[#allocation8 + $0x3e8] sm:$0xff]
        %v714 = vld [vmem:[#allocation8 + $0x3f0] sm:$0xff]
        %v715 = vld [vmem:[#allocation8 + $0x3f8] sm:$0xff]
        %716 = vmatprep.subr.mxu0 %v709
        %717 = vmatpush1.msra.mxu0 %v708
        %718 = vmatprep.subr.mxu0 %v701
        %719 = vmatpush1.msra.mxu0 %v700
        %720 = vmatprep.subr.mxu0 %v693
        %721 = vmatpush1.msra.mxu0 %v692
        %722 = vmatprep.subr.mxu0 %v685
        %723 = vmatpush1.msra.mxu0 %v684
        %724 = vmatprep.subr.mxu0 %v677
        %725 = vmatpush1.msra.mxu0 %v676
        %726 = vmatprep.subr.mxu0 %v669
        %727 = vmatpush1.msra.mxu0 %v668
        %728 = vmatprep.subr.mxu0 %v661
        %729 = vmatpush1.msra.mxu0 %v660
        %730 = vmatprep.subr.mxu0 %v653
        %731 = vmatpush1.msra.mxu0 %v652
        %732 = vmatprep.subr.mxu0 %v645
        %733 = vmatpush1.msra.mxu0 %v644
        %734 = vmatprep.subr.mxu0 %v637
        %735 = vmatpush1.msra.mxu0 %v636
        %736 = vmatprep.subr.mxu0 %v629
        %737 = vmatpush1.msra.mxu0 %v628
        %738 = vmatprep.subr.mxu0 %v621
        %739 = vmatpush1.msra.mxu0 %v620
        %740 = vmatprep.subr.mxu0 %v613
        %741 = vmatpush1.msra.mxu0 %v612
        %742 = vmatprep.subr.mxu0 %v605
        %743 = vmatpush1.msra.mxu0 %v604
        %744 = vmatprep.subr.mxu0 %v597
        %745 = vmatpush1.msra.mxu0 %v596
        %746 = vmatprep.subr.mxu0 %v589
        %747 = vmatpush1.msra.mxu0 %v588
        %748 = vmatprep.subr.mxu0 0.0
        %749 = vmatpush2.msra.mxu0 0.0
        %750 = vmatprep.subr.mxu0 0.0
        %751 = vmatpush2.msra.mxu0 0.0
        %752 = vmatprep.subr.mxu0 0.0
        %753 = vmatpush2.msra.mxu0 0.0
        %754 = vmatprep.subr.mxu0 0.0
        %755 = vmatpush2.msra.mxu0 0.0
        %756 = vmatprep.subr.mxu0 0.0
        %757 = vmatpush2.msra.mxu0 0.0
        %758 = vmatprep.subr.mxu0 0.0
        %759 = vmatpush2.msra.mxu0 0.0
        %760 = vmatprep.subr.mxu0 0.0
        %761 = vmatpush2.msra.mxu0 0.0
        %762 = vmatprep.subr.mxu0 0.0
        %763 = vmatpush2.msra.mxu0 0.0
        %764 = vmatprep.subr.mxu0 0.0
        %765 = vmatpush2.msra.mxu0 0.0
        %766 = vmatprep.subr.mxu0 0.0
        %767 = vmatpush2.msra.mxu0 0.0
        %768 = vmatprep.subr.mxu0 0.0
        %769 = vmatpush2.msra.mxu0 0.0
        %770 = vmatprep.subr.mxu0 0.0
        %771 = vmatpush2.msra.mxu0 0.0
        %772 = vmatprep.subr.mxu0 0.0
        %773 = vmatpush2.msra.mxu0 0.0
        %774 = vmatprep.subr.mxu0 0.0
        %775 = vmatpush2.msra.mxu0 0.0
        %776 = vmatprep.subr.mxu0 0.0
        %777 = vmatpush2.msra.mxu0 0.0
        %778 = vmatprep.subr.mxu0 0.0
        %779 = vmatpush2.msra.mxu0 0.0
        %780 = vmatprep.mubr.f32.mxu0 0.0
        %781 = vmatmul.mubr.f32.gmra.mxu0 %v586
        %v782 = vpop.f32.mrf.mxu0
        %v783 = vadd.f32 0.0, %v782
        %v784 = vpop.f32.mrf.mxu0
        %v785 = vadd.f32 0.0, %v784
        %786 = vmatprep.mubr.f32.mxu0 0.0
        %787 = vmatmul.mubr.f32.gmra.mxu0 %v587
        %v788 = vpop.f32.mrf.mxu0
        %v789 = vadd.f32 0.0, %v788
        %v790 = vpop.f32.mrf.mxu0
        %v791 = vadd.f32 0.0, %v790
        %792 = vdwg.mxu0
        %793 = vmatprep.subr.mxu0 %v711
        %794 = vmatpush1.msra.mxu0 %v710
        %795 = vmatprep.subr.mxu0 %v703
        %796 = vmatpush1.msra.mxu0 %v702
        %797 = vmatprep.subr.mxu0 %v695
        %798 = vmatpush1.msra.mxu0 %v694
        %799 = vmatprep.subr.mxu0 %v687
        %800 = vmatpush1.msra.mxu0 %v686
        %801 = vmatprep.subr.mxu0 %v679
        %802 = vmatpush1.msra.mxu0 %v678
        %803 = vmatprep.subr.mxu0 %v671
        %804 = vmatpush1.msra.mxu0 %v670
        %805 = vmatprep.subr.mxu0 %v663
        %806 = vmatpush1.msra.mxu0 %v662
        %807 = vmatprep.subr.mxu0 %v655
        %808 = vmatpush1.msra.mxu0 %v654
        %809 = vmatprep.subr.mxu0 %v647
        %810 = vmatpush1.msra.mxu0 %v646
        %811 = vmatprep.subr.mxu0 %v639
        %812 = vmatpush1.msra.mxu0 %v638
        %813 = vmatprep.subr.mxu0 %v631
        %814 = vmatpush1.msra.mxu0 %v630
        %815 = vmatprep.subr.mxu0 %v623
        %816 = vmatpush1.msra.mxu0 %v622
        %817 = vmatprep.subr.mxu0 %v615
        %818 = vmatpush1.msra.mxu0 %v614
        %819 = vmatprep.subr.mxu0 %v607
        %820 = vmatpush1.msra.mxu0 %v606
        %821 = vmatprep.subr.mxu0 %v599
        %822 = vmatpush1.msra.mxu0 %v598
        %823 = vmatprep.subr.mxu0 %v591
        %824 = vmatpush1.msra.mxu0 %v590
        %825 = vmatprep.subr.mxu0 0.0
        %826 = vmatpush2.msra.mxu0 0.0
        %827 = vmatprep.subr.mxu0 0.0
        %828 = vmatpush2.msra.mxu0 0.0
        %829 = vmatprep.subr.mxu0 0.0
        %830 = vmatpush2.msra.mxu0 0.0
        %831 = vmatprep.subr.mxu0 0.0
        %832 = vmatpush2.msra.mxu0 0.0
        %833 = vmatprep.subr.mxu0 0.0
        %834 = vmatpush2.msra.mxu0 0.0
        %835 = vmatprep.subr.mxu0 0.0
        %836 = vmatpush2.msra.mxu0 0.0
        %837 = vmatprep.subr.mxu0 0.0
        %838 = vmatpush2.msra.mxu0 0.0
        %839 = vmatprep.subr.mxu0 0.0
        %840 = vmatpush2.msra.mxu0 0.0
        %841 = vmatprep.subr.mxu0 0.0
        %842 = vmatpush2.msra.mxu0 0.0
        %843 = vmatprep.subr.mxu0 0.0
        %844 = vmatpush2.msra.mxu0 0.0
        %845 = vmatprep.subr.mxu0 0.0
        %846 = vmatpush2.msra.mxu0 0.0
        %847 = vmatprep.subr.mxu0 0.0
        %848 = vmatpush2.msra.mxu0 0.0
        %849 = vmatprep.subr.mxu0 0.0
        %850 = vmatpush2.msra.mxu0 0.0
        %851 = vmatprep.subr.mxu0 0.0
        %852 = vmatpush2.msra.mxu0 0.0
        %853 = vmatprep.subr.mxu0 0.0
        %854 = vmatpush2.msra.mxu0 0.0
        %855 = vmatprep.subr.mxu0 0.0
        %856 = vmatpush2.msra.mxu0 0.0
        %857 = vmatprep.mubr.f32.mxu0 0.0
        %858 = vmatmul.mubr.f32.gmra.mxu0 %v586
        %v859 = vpop.f32.mrf.mxu0
        %v860 = vadd.f32 0.0, %v859
        %v861 = vpop.f32.mrf.mxu0
        %v862 = vadd.f32 0.0, %v861
        %863 = vmatprep.mubr.f32.mxu0 0.0
        %864 = vmatmul.mubr.f32.gmra.mxu0 %v587
        %v865 = vpop.f32.mrf.mxu0
        %v866 = vadd.f32 0.0, %v865
        %v867 = vpop.f32.mrf.mxu0
        %v868 = vadd.f32 0.0, %v867
        %869 = vdwg.mxu0
        %870 = vmatprep.subr.mxu0 %v713
        %871 = vmatpush1.msra.mxu0 %v712
        %872 = vmatprep.subr.mxu0 %v705
        %873 = vmatpush1.msra.mxu0 %v704
        %874 = vmatprep.subr.mxu0 %v697
        %875 = vmatpush1.msra.mxu0 %v696
        %876 = vmatprep.subr.mxu0 %v689
        %877 = vmatpush1.msra.mxu0 %v688
        %878 = vmatprep.subr.mxu0 %v681
        %879 = vmatpush1.msra.mxu0 %v680
        %880 = vmatprep.subr.mxu0 %v673
        %881 = vmatpush1.msra.mxu0 %v672
        %882 = vmatprep.subr.mxu0 %v665
        %883 = vmatpush1.msra.mxu0 %v664
        %884 = vmatprep.subr.mxu0 %v657
        %885 = vmatpush1.msra.mxu0 %v656
        %886 = vmatprep.subr.mxu0 %v649
        %887 = vmatpush1.msra.mxu0 %v648
        %888 = vmatprep.subr.mxu0 %v641
        %889 = vmatpush1.msra.mxu0 %v640
        %890 = vmatprep.subr.mxu0 %v633
        %891 = vmatpush1.msra.mxu0 %v632
        %892 = vmatprep.subr.mxu0 %v625
        %893 = vmatpush1.msra.mxu0 %v624
        %894 = vmatprep.subr.mxu0 %v617
        %895 = vmatpush1.msra.mxu0 %v616
        %896 = vmatprep.subr.mxu0 %v609
        %897 = vmatpush1.msra.mxu0 %v608
        %898 = vmatprep.subr.mxu0 %v601
        %899 = vmatpush1.msra.mxu0 %v600
        %900 = vmatprep.subr.mxu0 %v593
        %901 = vmatpush1.msra.mxu0 %v592
        %902 = vmatprep.subr.mxu0 0.0
        %903 = vmatpush2.msra.mxu0 0.0
        %904 = vmatprep.subr.mxu0 0.0
        %905 = vmatpush2.msra.mxu0 0.0
        %906 = vmatprep.subr.mxu0 0.0
        %907 = vmatpush2.msra.mxu0 0.0
        %908 = vmatprep.subr.mxu0 0.0
        %909 = vmatpush2.msra.mxu0 0.0
        %910 = vmatprep.subr.mxu0 0.0
        %911 = vmatpush2.msra.mxu0 0.0
        %912 = vmatprep.subr.mxu0 0.0
        %913 = vmatpush2.msra.mxu0 0.0
        %914 = vmatprep.subr.mxu0 0.0
        %915 = vmatpush2.msra.mxu0 0.0
        %916 = vmatprep.subr.mxu0 0.0
        %917 = vmatpush2.msra.mxu0 0.0
        %918 = vmatprep.subr.mxu0 0.0
        %919 = vmatpush2.msra.mxu0 0.0
        %920 = vmatprep.subr.mxu0 0.0
        %921 = vmatpush2.msra.mxu0 0.0
        %922 = vmatprep.subr.mxu0 0.0
        %923 = vmatpush2.msra.mxu0 0.0
        %924 = vmatprep.subr.mxu0 0.0
        %925 = vmatpush2.msra.mxu0 0.0
        %926 = vmatprep.subr.mxu0 0.0
        %927 = vmatpush2.msra.mxu0 0.0
        %928 = vmatprep.subr.mxu0 0.0
        %929 = vmatpush2.msra.mxu0 0.0
        %930 = vmatprep.subr.mxu0 0.0
        %931 = vmatpush2.msra.mxu0 0.0
        %932 = vmatprep.subr.mxu0 0.0
        %933 = vmatpush2.msra.mxu0 0.0
        %934 = vmatprep.mubr.f32.mxu0 0.0
        %935 = vmatmul.mubr.f32.gmra.mxu0 %v586
        %v936 = vpop.f32.mrf.mxu0
        %v937 = vadd.f32 0.0, %v936
        %v938 = vpop.f32.mrf.mxu0
        %v939 = vadd.f32 0.0, %v938
        %940 = vmatprep.mubr.f32.mxu0 0.0
        %941 = vmatmul.mubr.f32.gmra.mxu0 %v587
        %v942 = vpop.f32.mrf.mxu0
        %v943 = vadd.f32 0.0, %v942
        %v944 = vpop.f32.mrf.mxu0
        %v945 = vadd.f32 0.0, %v944
        %946 = vdwg.mxu0
        %947 = vmatprep.subr.mxu0 %v715
        %948 = vmatpush1.msra.mxu0 %v714
        %949 = vmatprep.subr.mxu0 %v707
        %950 = vmatpush1.msra.mxu0 %v706
        %951 = vmatprep.subr.mxu0 %v699
        %952 = vmatpush1.msra.mxu0 %v698
        %953 = vmatprep.subr.mxu0 %v691
        %954 = vmatpush1.msra.mxu0 %v690
        %955 = vmatprep.subr.mxu0 %v683
        %956 = vmatpush1.msra.mxu0 %v682
        %957 = vmatprep.subr.mxu0 %v675
        %958 = vmatpush1.msra.mxu0 %v674
        %959 = vmatprep.subr.mxu0 %v667
        %960 = vmatpush1.msra.mxu0 %v666
        %961 = vmatprep.subr.mxu0 %v659
        %962 = vmatpush1.msra.mxu0 %v658
        %963 = vmatprep.subr.mxu0 %v651
        %964 = vmatpush1.msra.mxu0 %v650
        %965 = vmatprep.subr.mxu0 %v643
        %966 = vmatpush1.msra.mxu0 %v642
        %967 = vmatprep.subr.mxu0 %v635
        %968 = vmatpush1.msra.mxu0 %v634
        %969 = vmatprep.subr.mxu0 %v627
        %970 = vmatpush1.msra.mxu0 %v626
        %971 = vmatprep.subr.mxu0 %v619
        %972 = vmatpush1.msra.mxu0 %v618
        %973 = vmatprep.subr.mxu0 %v611
        %974 = vmatpush1.msra.mxu0 %v610
        %975 = vmatprep.subr.mxu0 %v603
        %976 = vmatpush1.msra.mxu0 %v602
        %977 = vmatprep.subr.mxu0 %v595
        %978 = vmatpush1.msra.mxu0 %v594
        %979 = vmatprep.subr.mxu0 0.0
        %980 = vmatpush2.msra.mxu0 0.0
        %981 = vmatprep.subr.mxu0 0.0
        %982 = vmatpush2.msra.mxu0 0.0
        %983 = vmatprep.subr.mxu0 0.0
        %984 = vmatpush2.msra.mxu0 0.0
        %985 = vmatprep.subr.mxu0 0.0
        %986 = vmatpush2.msra.mxu0 0.0
        %987 = vmatprep.subr.mxu0 0.0
        %988 = vmatpush2.msra.mxu0 0.0
        %989 = vmatprep.subr.mxu0 0.0
        %990 = vmatpush2.msra.mxu0 0.0
        %991 = vmatprep.subr.mxu0 0.0
        %992 = vmatpush2.msra.mxu0 0.0
        %993 = vmatprep.subr.mxu0 0.0
        %994 = vmatpush2.msra.mxu0 0.0
        %995 = vmatprep.subr.mxu0 0.0
        %996 = vmatpush2.msra.mxu0 0.0
        %997 = vmatprep.subr.mxu0 0.0
        %998 = vmatpush2.msra.mxu0 0.0
        %999 = vmatprep.subr.mxu0 0.0
        %1000 = vmatpush2.msra.mxu0 0.0
        %1001 = vmatprep.subr.mxu0 0.0
        %1002 = vmatpush2.msra.mxu0 0.0
        %1003 = vmatprep.subr.mxu0 0.0
        %1004 = vmatpush2.msra.mxu0 0.0
        %1005 = vmatprep.subr.mxu0 0.0
        %1006 = vmatpush2.msra.mxu0 0.0
        %1007 = vmatprep.subr.mxu0 0.0
        %1008 = vmatpush2.msra.mxu0 0.0
        %1009 = vmatprep.subr.mxu0 0.0
        %1010 = vmatpush2.msra.mxu0 0.0
        %1011 = vmatprep.mubr.f32.mxu0 0.0
        %1012 = vmatmul.mubr.f32.gmra.mxu0 %v586
        %v1013 = vpop.f32.mrf.mxu0
        %v1014 = vadd.f32 0.0, %v1013
        %v1015 = vpop.f32.mrf.mxu0
        %v1016 = vadd.f32 0.0, %v1015
        %1017 = vmatprep.mubr.f32.mxu0 0.0
        %1018 = vmatmul.mubr.f32.gmra.mxu0 %v587
        %v1019 = vpop.f32.mrf.mxu0
        %v1020 = vadd.f32 0.0, %v1019
        %v1021 = vpop.f32.mrf.mxu0
        %v1022 = vadd.f32 0.0, %v1021
        %1023 = vdwg.mxu0
        %v1024 = vmax.f32 %v783, %v789
        %v1025 = vrot.slane %v1024, 4
        %v1026 = vmax.f32 %v1024, %v1025
        %v1027 = vrot.slane %v1026, 2
        %v1028 = vmax.f32 %v1026, %v1027
        %v1029 = vrot.slane %v1028, 1
        %v1030 = vmax.f32 %v1028, %v1029
        %v1031 = vmax.f32 %v785, %v791
        %v1032 = vrot.slane %v1031, 4
        %v1033 = vmax.f32 %v1031, %v1032
        %v1034 = vrot.slane %v1033, 2
        %v1035 = vmax.f32 %v1033, %v1034
        %v1036 = vrot.slane %v1035, 1
        %v1037 = vmax.f32 %v1035, %v1036
        %v1038 = vmax.f32 %v860, %v866
        %v1039 = vrot.slane %v1038, 4
        %v1040 = vmax.f32 %v1038, %v1039
        %v1041 = vrot.slane %v1040, 2
        %v1042 = vmax.f32 %v1040, %v1041
        %v1043 = vrot.slane %v1042, 1
        %v1044 = vmax.f32 %v1042, %v1043
        %v1045 = vmax.f32 %v862, %v868
        %v1046 = vrot.slane %v1045, 4
        %v1047 = vmax.f32 %v1045, %v1046
        %v1048 = vrot.slane %v1047, 2
        %v1049 = vmax.f32 %v1047, %v1048
        %v1050 = vrot.slane %v1049, 1
        %v1051 = vmax.f32 %v1049, %v1050
        %v1052 = vmax.f32 %v937, %v943
        %v1053 = vrot.slane %v1052, 4
        %v1054 = vmax.f32 %v1052, %v1053
        %v1055 = vrot.slane %v1054, 2
        %v1056 = vmax.f32 %v1054, %v1055
        %v1057 = vrot.slane %v1056, 1
        %v1058 = vmax.f32 %v1056, %v1057
        %v1059 = vmax.f32 %v939, %v945
        %v1060 = vrot.slane %v1059, 4
        %v1061 = vmax.f32 %v1059, %v1060
        %v1062 = vrot.slane %v1061, 2
        %v1063 = vmax.f32 %v1061, %v1062
        %v1064 = vrot.slane %v1063, 1
        %v1065 = vmax.f32 %v1063, %v1064
        %v1066 = vmax.f32 %v1014, %v1020
        %v1067 = vrot.slane %v1066, 4
        %v1068 = vmax.f32 %v1066, %v1067
        %v1069 = vrot.slane %v1068, 2
        %v1070 = vmax.f32 %v1068, %v1069
        %v1071 = vrot.slane %v1070, 1
        %v1072 = vmax.f32 %v1070, %v1071
        %v1073 = vmax.f32 %v1016, %v1022
        %v1074 = vrot.slane %v1073, 4
        %v1075 = vmax.f32 %v1073, %v1074
        %v1076 = vrot.slane %v1075, 2
        %v1077 = vmax.f32 %v1075, %v1076
        %v1078 = vrot.slane %v1077, 1
        %v1079 = vmax.f32 %v1077, %v1078
        %v1080 = vadd.f32 %v783, %v789
        %v1081 = vrot.slane %v1080, 4
        %v1082 = vadd.f32 %v1080, %v1081
        %v1083 = vrot.slane %v1082, 2
        %v1084 = vadd.f32 %v1082, %v1083
        %v1085 = vrot.slane %v1084, 1
        %v1086 = vadd.f32 %v1084, %v1085
        %v1087 = vadd.f32 %v785, %v791
        %v1088 = vrot.slane %v1087, 4
        %v1089 = vadd.f32 %v1087, %v1088
        %v1090 = vrot.slane %v1089, 2
        %v1091 = vadd.f32 %v1089, %v1090
        %v1092 = vrot.slane %v1091, 1
        %v1093 = vadd.f32 %v1091, %v1092
        %v1094 = vadd.f32 %v860, %v866
        %v1095 = vrot.slane %v1094, 4
        %v1096 = vadd.f32 %v1094, %v1095
        %v1097 = vrot.slane %v1096, 2
        %v1098 = vadd.f32 %v1096, %v1097
        %v1099 = vrot.slane %v1098, 1
        %v1100 = vadd.f32 %v1098, %v1099
        %v1101 = vadd.f32 %v862, %v868
        %v1102 = vrot.slane %v1101, 4
        %v1103 = vadd.f32 %v1101, %v1102
        %v1104 = vrot.slane %v1103, 2
        %v1105 = vadd.f32 %v1103, %v1104
        %v1106 = vrot.slane %v1105, 1
        %v1107 = vadd.f32 %v1105, %v1106
        %v1108 = vadd.f32 %v937, %v943
        %v1109 = vrot.slane %v1108, 4
        %v1110 = vadd.f32 %v1108, %v1109
        %v1111 = vrot.slane %v1110, 2
        %v1112 = vadd.f32 %v1110, %v1111
        %v1113 = vrot.slane %v1112, 1
        %v1114 = vadd.f32 %v1112, %v1113
        %v1115 = vadd.f32 %v939, %v945
        %v1116 = vrot.slane %v1115, 4
        %v1117 = vadd.f32 %v1115, %v1116
        %v1118 = vrot.slane %v1117, 2
        %v1119 = vadd.f32 %v1117, %v1118
        %v1120 = vrot.slane %v1119, 1
        %v1121 = vadd.f32 %v1119, %v1120
        %v1122 = vadd.f32 %v1014, %v1020
        %v1123 = vrot.slane %v1122, 4
        %v1124 = vadd.f32 %v1122, %v1123
        %v1125 = vrot.slane %v1124, 2
        %v1126 = vadd.f32 %v1124, %v1125
        %v1127 = vrot.slane %v1126, 1
        %v1128 = vadd.f32 %v1126, %v1127
        %v1129 = vadd.f32 %v1016, %v1022
        %v1130 = vrot.slane %v1129, 4
        %v1131 = vadd.f32 %v1129, %v1130
        %v1132 = vrot.slane %v1131, 2
        %v1133 = vadd.f32 %v1131, %v1132
        %v1134 = vrot.slane %v1133, 1
        %v1135 = vadd.f32 %v1133, %v1134
        %v1136 = vmul.f32 %v783, %v783
        %v1137 = vmul.f32 %v785, %v785
        %v1138 = vmul.f32 %v860, %v860
        %v1139 = vmul.f32 %v862, %v862
        %v1140 = vmul.f32 %v937, %v937
        %v1141 = vmul.f32 %v939, %v939
        %v1142 = vmul.f32 %v1014, %v1014
        %v1143 = vmul.f32 %v1016, %v1016
        %v1144 = vmul.f32 %v789, %v789
        %v1145 = vmul.f32 %v791, %v791
        %v1146 = vmul.f32 %v866, %v866
        %v1147 = vmul.f32 %v868, %v868
        %v1148 = vmul.f32 %v943, %v943
        %v1149 = vmul.f32 %v945, %v945
        %v1150 = vmul.f32 %v1020, %v1020
        %v1151 = vmul.f32 %v1022, %v1022
        %v1152 = vadd.f32 %v1136, %v1144
        %v1153 = vrot.slane %v1152, 4
        %v1154 = vadd.f32 %v1152, %v1153
        %v1155 = vrot.slane %v1154, 2
        %v1156 = vadd.f32 %v1154, %v1155
        %v1157 = vrot.slane %v1156, 1
        %v1158 = vadd.f32 %v1156, %v1157
        %v1159 = vadd.f32 %v1137, %v1145
        %v1160 = vrot.slane %v1159, 4
        %v1161 = vadd.f32 %v1159, %v1160
        %v1162 = vrot.slane %v1161, 2
        %v1163 = vadd.f32 %v1161, %v1162
        %v1164 = vrot.slane %v1163, 1
        %v1165 = vadd.f32 %v1163, %v1164
        %v1166 = vadd.f32 %v1138, %v1146
        %v1167 = vrot.slane %v1166, 4
        %v1168 = vadd.f32 %v1166, %v1167
        %v1169 = vrot.slane %v1168, 2
        %v1170 = vadd.f32 %v1168, %v1169
        %v1171 = vrot.slane %v1170, 1
        %v1172 = vadd.f32 %v1170, %v1171
        %v1173 = vadd.f32 %v1139, %v1147
        %v1174 = vrot.slane %v1173, 4
        %v1175 = vadd.f32 %v1173, %v1174
        %v1176 = vrot.slane %v1175, 2
        %v1177 = vadd.f32 %v1175, %v1176
        %v1178 = vrot.slane %v1177, 1
        %v1179 = vadd.f32 %v1177, %v1178
        %v1180 = vadd.f32 %v1140, %v1148
        %v1181 = vrot.slane %v1180, 4
        %v1182 = vadd.f32 %v1180, %v1181
        %v1183 = vrot.slane %v1182, 2
        %v1184 = vadd.f32 %v1182, %v1183
        %v1185 = vrot.slane %v1184, 1
        %v1186 = vadd.f32 %v1184, %v1185
        %v1187 = vadd.f32 %v1141, %v1149
        %v1188 = vrot.slane %v1187, 4
        %v1189 = vadd.f32 %v1187, %v1188
        %v1190 = vrot.slane %v1189, 2
        %v1191 = vadd.f32 %v1189, %v1190
        %v1192 = vrot.slane %v1191, 1
        %v1193 = vadd.f32 %v1191, %v1192
        %v1194 = vadd.f32 %v1142, %v1150
        %v1195 = vrot.slane %v1194, 4
        %v1196 = vadd.f32 %v1194, %v1195
        %v1197 = vrot.slane %v1196, 2
        %v1198 = vadd.f32 %v1196, %v1197
        %v1199 = vrot.slane %v1198, 1
        %v1200 = vadd.f32 %v1198, %v1199
        %v1201 = vadd.f32 %v1143, %v1151
        %v1202 = vrot.slane %v1201, 4
        %v1203 = vadd.f32 %v1201, %v1202
        %v1204 = vrot.slane %v1203, 2
        %v1205 = vadd.f32 %v1203, %v1204
        %v1206 = vrot.slane %v1205, 1
        %v1207 = vadd.f32 %v1205, %v1206
        %v1208 = vmul.f32 %v1086, 0.0625
        %v1209 = vmul.f32 %v1093, 0.0625
        %v1210 = vmul.f32 %v1100, 0.0625
        %v1211 = vmul.f32 %v1107, 0.0625
        %v1212 = vmul.f32 %v1114, 0.0625
        %v1213 = vmul.f32 %v1121, 0.0625
        %v1214 = vmul.f32 %v1128, 0.0625
        %v1215 = vmul.f32 %v1135, 0.0625
        %v1216 = vmul.f32 %v1158, 0.0625
        %v1217 = vmul.f32 %v1165, 0.0625
        %v1218 = vmul.f32 %v1172, 0.0625
        %v1219 = vmul.f32 %v1179, 0.0625
        %v1220 = vmul.f32 %v1186, 0.0625
        %v1221 = vmul.f32 %v1193, 0.0625
        %v1222 = vmul.f32 %v1200, 0.0625
        %v1223 = vmul.f32 %v1207, 0.0625
        %v1224 = vmul.f32 %v1208, %v1208
        %v1225 = vmul.f32 %v1209, %v1209
        %v1226 = vmul.f32 %v1210, %v1210
        %v1227 = vmul.f32 %v1211, %v1211
        %v1228 = vmul.f32 %v1212, %v1212
        %v1229 = vmul.f32 %v1213, %v1213
        %v1230 = vmul.f32 %v1214, %v1214
        %v1231 = vmul.f32 %v1215, %v1215
        %v1232 = vsub.f32 %v1216, %v1224
        %v1233 = vsub.f32 %v1217, %v1225
        %v1234 = vsub.f32 %v1218, %v1226
        %v1235 = vsub.f32 %v1219, %v1227
        %v1236 = vsub.f32 %v1220, %v1228
        %v1237 = vsub.f32 %v1221, %v1229
        %v1238 = vsub.f32 %v1222, %v1230
        %v1239 = vsub.f32 %v1223, %v1231
        %v1240 = vmax.f32 %v1232, 0.0
        %v1241 = vmax.f32 %v1233, 0.0
        %v1242 = vmax.f32 %v1234, 0.0
        %v1243 = vmax.f32 %v1235, 0.0
        %v1244 = vmax.f32 %v1236, 0.0
        %v1245 = vmax.f32 %v1237, 0.0
        %v1246 = vmax.f32 %v1238, 0.0
        %v1247 = vmax.f32 %v1239, 0.0
        %v1248 = vsub.f32 %v1030, %v1208
        %v1249 = vsub.f32 %v1037, %v1209
        %v1250 = vsub.f32 %v1044, %v1210
        %v1251 = vsub.f32 %v1051, %v1211
        %v1252 = vsub.f32 %v1058, %v1212
        %v1253 = vsub.f32 %v1065, %v1213
        %v1254 = vsub.f32 %v1072, %v1214
        %v1255 = vsub.f32 %v1079, %v1215
        %v1256 = vadd.f32 %v1240, 1e-05
        %v1257 = vadd.f32 %v1241, 1e-05
        %v1258 = vadd.f32 %v1242, 1e-05
        %v1259 = vadd.f32 %v1243, 1e-05
        %v1260 = vadd.f32 %v1244, 1e-05
        %v1261 = vadd.f32 %v1245, 1e-05
        %v1262 = vadd.f32 %v1246, 1e-05
        %v1263 = vadd.f32 %v1247, 1e-05
        %v1264 = vrsqrt.pop %v1256
        %v1265 = vrsqrt.pop %v1257
        %v1266 = vrsqrt.pop %v1258
        %v1267 = vrsqrt.pop %v1259
        %v1268 = vrsqrt.pop %v1260
        %v1269 = vrsqrt.pop %v1261
        %v1270 = vrsqrt.pop %v1262
        %v1271 = vrsqrt.pop %v1263
        %v1272 = vmul.f32 %v1248, %v1264
        %v1273 = vmul.f32 %v1249, %v1265
        %v1274 = vmul.f32 %v1250, %v1266
        %v1275 = vmul.f32 %v1251, %v1267
        %v1276 = vmul.f32 %v1252, %v1268
        %v1277 = vmul.f32 %v1253, %v1269
        %v1278 = vmul.f32 %v1254, %v1270
        %v1279 = vmul.f32 %v1255, %v1271
        %v1280 = vmax.f32 %v1272, 0.0
        %v1281 = vmax.f32 %v1273, 0.0
        %v1282 = vmax.f32 %v1274, 0.0
        %v1283 = vmax.f32 %v1275, 0.0
        %v1284 = vmax.f32 %v1276, 0.0
        %v1285 = vmax.f32 %v1277, 0.0
        %v1286 = vmax.f32 %v1278, 0.0
        %v1287 = vmax.f32 %v1279, 0.0
        %v1296 = vcombine.low %v1280, %v1281
        %v1297 = vcombine.low %v1282, %v1283
        %v1298 = vcombine.low %v1284, %v1285
        %v1299 = vcombine.low %v1286, %v1287
        %v1301 = vunpack.c.l.s4 1966171168
        %v1302 = vunpack.c.0.s8 %v1301
        %v1303 = vlaneseq
        %v1304 = vshrl.u32 %v1303, 7
        %v1305 = vsub.s32 %v1302, %v1304
        %v1306 = vrot.slane %v1296, %v1305
        %v1308 = vunpack.c.l.s4 1966171168
        %v1309 = vunpack.c.0.s8 %v1308
        %v1310 = vlaneseq
        %v1311 = vshrl.u32 %v1310, 7
        %v1312 = vsub.s32 %v1309, %v1311
        %v1313 = vrot.slane %v1297, %v1312
        %v1315 = vunpack.c.l.s4 1966171168
        %v1316 = vunpack.c.0.s8 %v1315
        %v1317 = vlaneseq
        %v1318 = vshrl.u32 %v1317, 7
        %v1319 = vsub.s32 %v1316, %v1318
        %v1320 = vrot.slane %v1298, %v1319
        %v1322 = vunpack.c.l.s4 1966171168
        %v1323 = vunpack.c.0.s8 %v1322
        %v1324 = vlaneseq
        %v1325 = vshrl.u32 %v1324, 7
        %v1326 = vsub.s32 %v1323, %v1325
        %v1327 = vrot.slane %v1299, %v1326
        %v1328 = vcombine.low %v1306, %v1313
        %v1329 = vcombine.low %v1320, %v1327
        %v1331 = vunpack.c.l.s4 1966171168
        %v1332 = vunpack.c.0.s8 %v1331
        %v1333 = vlaneseq
        %v1334 = vshrl.u32 %v1333, 7
        %v1335 = vsub.s32 %v1332, %v1334
        %v1336 = vrot.slane %v1328, %v1335
        %v1338 = vunpack.c.l.s4 1966171168
        %v1339 = vunpack.c.0.s8 %v1338
        %v1340 = vlaneseq
        %v1341 = vshrl.u32 %v1340, 7
        %v1342 = vsub.s32 %v1339, %v1341
        %v1343 = vrot.slane %v1329, %v1342
        %v1344 = vcombine.low %v1336, %v1343
        %1346 = vst [vmem:[%s308] sm:$0xff] %v1344
        %s1347 = sand.u32 %s164, 1
        %s1348 = scalar_lea.sflag [#allocation4], %s1347
        %s1349 = sand.u32 %s164, 1
        %s1350 = smul.addr %s1349, 8
        %s1351 = scalar_lea.vmem [#allocation10], %s1350
        // Predicated region
        $region61: #{tpu_custom_call.1} parent=43 // pred_check
          %p1352 = pneg %p174
        $region62: #{tpu_custom_call.1} parent=43 // pred_check_branch
          %1354 = sbr.rel (%p1352) target = $region64
        $region63: #{tpu_custom_call.1} parent=43 // pred_region
          %s1356 = ssub.s32 128, 128
          %1357 = vsyncadd %s1348, %s1356
          %s1358 = smul.addr %s25, 8
          %s1359 = smul.addr %s1358, 16
          %s1360 = scalar_lea.hbm %s6, %s1359
          %s1362 = sshll.u32 %s1351, 4
          %s1363 = int_to_ptr.vmem [resolvable:$true] %s1362
          %1365 = dma.vmem_to_hbm [thread:$0]  %s1363, 128, %s1360, %s1348
        $region64: #{tpu_custom_call.1} parent=43 // pred_fallthru
          _
      $region44: #{tpu_custom_call.1} parent=5 // pred_fallthru
        _
      %p1366 = scmp.le.s32.totalorder 2, %s20
      // Predicated region
      $region65: #{tpu_custom_call.1} parent=5 // pred_check
        %p1367 = pneg %p1366
      $region66: #{tpu_custom_call.1} parent=5 // pred_check_branch
        %1369 = sbr.rel (%p1367) target = $region68
      $region67: #{tpu_custom_call.1} parent=5 // pred_region
        %s1370 = ssub.s32 %s20, 2
        // Predicated region
        $region69: #{tpu_custom_call.1} parent=67 // pred_check
          %p1371 = pneg %p180
        $region70: #{tpu_custom_call.1} parent=67 // pred_check_branch
          %1373 = sbr.rel (%p1371) target = $region72
        $region71: #{tpu_custom_call.1} parent=67 // pred_region
          %s1374 = sand.u32 %s165, 1
          %s1375 = scalar_lea.sflag [#allocation4], %s1374
          %s1376 = sand.u32 %s165, 1
          %s1377 = smul.addr %s1376, 8
          %s1378 = scalar_lea.vmem [#allocation10], %s1377
          %1379 = dma.done %s1375, 128
        $region72: #{tpu_custom_call.1} parent=67 // pred_fallthru
          _
      $region68: #{tpu_custom_call.1} parent=5 // pred_fallthru
        _
    $region6: #{tpu_custom_call.1} parent=1 // loop_footer
      %s24 = sadd.s32 1, %s20
    $region7: #{tpu_custom_call.1} parent=1 // loop_footer_branch
      %19 = sbr.rel target = $region3
    $region8: #{tpu_custom_call.1} parent=1 // loop_exit
      _
    %1380 = vsyncpa [#allocation3], 1
    %s1381 = scalar_lea.sflag [#allocation3], 1
    %1382 = vsyncpa %s1381, 1
    %1383 = vsyncpa [#allocation6], 1
    %1384 = vsyncpa [#allocation9], 1
    %1385 = vsyncpa [#allocation4], 1
    %s1386 = scalar_lea.sflag [#allocation4], 1
    %1387 = vsyncpa %s1386, 1

</llo_original>
